<compile_context>
chip_gen: v7x
topology: tpu7x:2x2x1
jax: 0.10.0
libtpu: 0.0.40
codegen_flags: <defaults>
</compile_context>

<pallas_src>
import functools

import jax
import jax.numpy as jnp
import numpy as np
from jax import lax
from jax.experimental import pallas as pl
from jax.experimental.pallas import tpu as pltpu


# ---------------------------------------------------------------------------
# Stage 1 kernel: hoisted input projection, one big MXU matmul.
#   gx[m, :] = x2d[m, :] @ W_ih_padded + (b_ih + b_hh)_padded
# ---------------------------------------------------------------------------
def _input_proj_kernel(x_ref, wih_ref, b_ref, gx_ref):
    gx_ref[...] = (
        jnp.dot(x_ref[...], wih_ref[...], preferred_element_type=jnp.float32)
        + b_ref[...]
    ).astype(gx_ref.dtype)


# ---------------------------------------------------------------------------
# Stage 2 kernel: serial LSTM recurrence, T timesteps per grid step.
# ---------------------------------------------------------------------------
def _lstm_recurrence_kernel(gx_ref, whh_ref, len_ref, out_ref, h_ref, c_ref):
    """One grid step processes T consecutive timesteps.

    gx_ref  : (T, B, 4*Hp)  precomputed x-projection (+ bias) for this block
    whh_ref : (Hp, 4*Hp)    hidden->gates weight (gate-padded)
    len_ref : (B, 1) int32  sequence lengths
    out_ref : (T, B, Hp)    output slab (lane-dense: Hp % 128 == 0)
    h_ref   : (B, Hp)       persistent hidden state (VMEM scratch)
    c_ref   : (B, Hp)       persistent cell state   (VMEM scratch)
    """
    blk = pl.program_id(0)
    T = gx_ref.shape[0]
    Hp = h_ref.shape[1]

    @pl.when(blk == 0)
    def _():
        h_ref[...] = jnp.zeros_like(h_ref)
        c_ref[...] = jnp.zeros_like(c_ref)

    # Hoisted out of the inner loop: resident weight + lengths vector.
    whh = whh_ref[...]                       # (Hp, 4*Hp)
    lens = len_ref[...]                      # (B, 1)
    t0 = blk * T

    def step(tt, carry):
        h, c = carry
        # Only the truly serial matmul remains in the recurrence.
        gates = gx_ref[tt] + jnp.dot(h, whh,
                                     preferred_element_type=jnp.float32)
        # Gate slices are 128-lane aligned (each gate block is Hp wide).
        i_g = jax.nn.sigmoid(gates[:, 0 * Hp:1 * Hp])
        f_g = jax.nn.sigmoid(gates[:, 1 * Hp:2 * Hp])
        g_g = jnp.tanh(gates[:, 2 * Hp:3 * Hp])
        o_g = jax.nn.sigmoid(gates[:, 3 * Hp:4 * Hp])
        c_new = f_g * c + i_g * g_g
        h_new = o_g * jnp.tanh(c_new)
        # pad_packed_sequence zero-pads timesteps beyond each length.
        mask = (t0 + tt) < lens              # (B, 1) bool
        out_ref[tt] = jnp.where(mask, h_new, 0.0).astype(out_ref.dtype)
        return h_new, c_new

    h_fin, c_fin = lax.fori_loop(0, T, step, (h_ref[...], c_ref[...]),
                                 unroll=True)
    h_ref[...] = h_fin
    c_ref[...] = c_fin


# ---------------------------------------------------------------------------
# Wrapper
# ---------------------------------------------------------------------------
def _round_up(n, m):
    return ((n + m - 1) // m) * m


def _pad_to(a, axis, size):
    pad = size - a.shape[axis]
    if pad <= 0:
        return a
    widths = [(0, 0)] * a.ndim
    widths[axis] = (0, pad)
    return jnp.pad(a, widths)


@functools.partial(jax.jit, static_argnames=("hidden_size", "block_t"))
def rnn_forward(x, lengths, w_ih, w_hh, b_ih, b_hh, *, hidden_size,
                block_t=16):
    """LSTM forward matching the PyTorch RNN wrapper.

    Args:
      x:        f32[seq_len, batch, input_size]
      lengths:  i32[batch]
      w_ih:     f32[4*hidden, input_size]   (PyTorch gate order i, f, g, o)
      w_hh:     f32[4*hidden, hidden]
      b_ih/b_hh f32[4*hidden]
      hidden_size: H
      block_t:  timesteps processed per recurrence grid step.

    Returns:
      (h, lengths) with h: f32[seq_len, batch, hidden], padded steps zeroed.
    """
    seq_len, batch, input_size = x.shape
    H = hidden_size
    Hp = _round_up(H, 128)               # lane-aligned hidden width
    G = 4 * Hp

    # --- gate-padded, pre-transposed parameters ---------------------------
    # Columns are laid out as [gate_i | gate_f | gate_g | gate_o], each Hp
    # wide; padded columns/rows are zero so padded hidden lanes stay zero.
    wih_p = _pad_to(jnp.transpose(w_ih).reshape(input_size, 4, H), 2, Hp)
    wih_p = wih_p.reshape(input_size, G)                       # (I, 4*Hp)
    whh_p = jnp.transpose(w_hh).reshape(H, 4, H)
    whh_p = _pad_to(_pad_to(whh_p, 2, Hp), 0, Hp).reshape(Hp, G)   # (Hp, 4*Hp)
    bias_p = _pad_to((b_ih + b_hh).reshape(4, H), 1, Hp).reshape(1, G)

    # --- time blocking -----------------------------------------------------
    T = min(block_t, seq_len)
    n_blocks = pl.cdiv(seq_len, T)
    seq_pad = n_blocks * T
    x_p = _pad_to(x, 0, seq_pad)

    # --- Stage 1: hoisted input projection (M = seq_pad * batch) -----------
    M = seq_pad * batch
    bm = 256 if M >= 256 else _round_up(M, 8)     # sublane-aligned M tile
    Mp = _round_up(M, bm)
    x2d = _pad_to(x_p.reshape(M, input_size), 0, Mp)

    gx_flat = pl.pallas_call(
        _input_proj_kernel,
        out_shape=jax.ShapeDtypeStruct((Mp, G), jnp.float32),
        grid_spec=pltpu.PrefetchScalarGridSpec(
            num_scalar_prefetch=0,
            grid=(Mp // bm,),
            in_specs=[
                pl.BlockSpec((bm, input_size), lambda m: (m, 0)),
                pl.BlockSpec((input_size, G), lambda m: (0, 0)),
                pl.BlockSpec((1, G), lambda m: (0, 0)),
            ],
            out_specs=pl.BlockSpec((bm, G), lambda m: (m, 0)),
        ),
        compiler_params=pltpu.CompilerParams(
            dimension_semantics=("parallel",)),
    )(x2d, wih_p, bias_p)

    gx = gx_flat[:M].reshape(seq_pad, batch, G)   # (seq_pad, B, 4*Hp)

    # --- Stage 2: serial recurrence, T timesteps per grid step -------------
    len2d = lengths.astype(jnp.int32).reshape(batch, 1)

    out = pl.pallas_call(
        _lstm_recurrence_kernel,
        out_shape=jax.ShapeDtypeStruct((seq_pad, batch, Hp), jnp.float32),
        grid_spec=pltpu.PrefetchScalarGridSpec(
            num_scalar_prefetch=0,
            grid=(n_blocks,),
            in_specs=[
                pl.BlockSpec((T, batch, G), lambda b: (b, 0, 0)),
                pl.BlockSpec((Hp, G), lambda b: (0, 0)),
                pl.BlockSpec((batch, 1), lambda b: (0, 0)),
            ],
            out_specs=pl.BlockSpec((T, batch, Hp), lambda b: (b, 0, 0)),
            scratch_shapes=[
                pltpu.VMEM((batch, Hp), jnp.float32),   # h state
                pltpu.VMEM((batch, Hp), jnp.float32),   # c state
            ],
        ),
        compiler_params=pltpu.CompilerParams(
            dimension_semantics=("arbitrary",)),
    )(gx, whh_p, len2d)

    return out[:seq_len, :, :H], lengths


# ---------------------------------------------------------------------------
# Pure-JAX reference (lax.scan) for correctness checking.
# ---------------------------------------------------------------------------
def _reference_lstm(x, lengths, w_ih, w_hh, b_ih, b_hh, hidden_size):
    seq_len, batch, _ = x.shape

    def step(carry, x_t):
        h, c = carry
        gates = x_t @ w_ih.T + h @ w_hh.T + b_ih + b_hh
        i = jax.nn.sigmoid(gates[:, 0:hidden_size])
        f = jax.nn.sigmoid(gates[:, hidden_size:2 * hidden_size])
        g = jnp.tanh(gates[:, 2 * hidden_size:3 * hidden_size])
        o = jax.nn.sigmoid(gates[:, 3 * hidden_size:4 * hidden_size])
        c = f * c + i * g
        h = o * jnp.tanh(c)
        return (h, c), h

    init = (jnp.zeros((batch, hidden_size), jnp.float32),
            jnp.zeros((batch, hidden_size), jnp.float32))
    _, hs = jax.lax.scan(step, init, x)
    t_idx = jnp.arange(seq_len)[:, None, None]
    mask = t_idx < lengths[None, :, None]
    return jnp.where(mask, hs, 0.0)


if __name__ == "__main__":
    # Module hyper-parameters (small shapes).
    seq_len, batch, input_size, hidden_size = 8, 2, 16, 32
    forget_gate_bias = 1.0

    key = jax.random.PRNGKey(0)
    k_x, k_wih, k_whh, k_bih, k_bhh, k_x2 = jax.random.split(key, 6)

    # PyTorch-style init: U(-1/sqrt(H), 1/sqrt(H)).
    scale = 1.0 / np.sqrt(hidden_size)
    w_ih = jax.random.uniform(k_wih, (4 * hidden_size, input_size),
                              jnp.float32, -scale, scale)
    w_hh = jax.random.uniform(k_whh, (4 * hidden_size, hidden_size),
                              jnp.float32, -scale, scale)
    b_ih = jax.random.uniform(k_bih, (4 * hidden_size,),
                              jnp.float32, -scale, scale)
    b_hh = jax.random.uniform(k_bhh, (4 * hidden_size,),
                              jnp.float32, -scale, scale)
    # forget_gate_bias handling from RNN.__init__ (LSTM + bias case).
    b_ih = b_ih.at[hidden_size:2 * hidden_size].set(forget_gate_bias)
    b_hh = b_hh.at[hidden_size:2 * hidden_size].set(0.0)

    x = jax.random.normal(k_x, (seq_len, batch, input_size), jnp.float32)
    lengths = jnp.array([8, 5], dtype=jnp.int32)

    h_out, lens_out = rnn_forward(x, lengths, w_ih, w_hh, b_ih, b_hh,
                                  hidden_size=hidden_size)
    jax.block_until_ready(h_out)

    ref = _reference_lstm(x, lengths, w_ih, w_hh, b_ih, b_hh, hidden_size)
    np.testing.assert_allclose(np.asarray(h_out), np.asarray(ref),
                               rtol=1e-4, atol=1e-5)
    assert h_out.shape == (seq_len, batch, hidden_size)
    assert np.array_equal(np.asarray(lens_out), np.asarray(lengths))

    # Second config: exercises multi-block recurrence (seq_len not a multiple
    # of T) and state persistence across grid steps.
    seq2, batch2 = 10, 3
    x2 = jax.random.normal(k_x2, (seq2, batch2, input_size), jnp.float32)
    lengths2 = jnp.array([10, 7, 3], dtype=jnp.int32)
    h2, l2 = rnn_forward(x2, lengths2, w_ih, w_hh, b_ih, b_hh,
                         hidden_size=hidden_size, block_t=4)
    jax.block_until_ready(h2)
    ref2 = _reference_lstm(x2, lengths2, w_ih, w_hh, b_ih, b_hh, hidden_size)
    np.testing.assert_allclose(np.asarray(h2), np.asarray(ref2),
                               rtol=1e-4, atol=1e-5)
    assert np.array_equal(np.asarray(l2), np.asarray(lengths2))

    print("KERNEL_OK")
</pallas_src>

<mosaic_0001>
module attributes {stable_mosaic.version = 11 : i64} {
  func.func @_lstm_recurrence_kernel(%arg0: i32, %arg1: memref<8x2x512xf32, #tpu.memory_space<vmem>>, %arg2: memref<128x512xf32, #tpu.memory_space<vmem>>, %arg3: memref<2x1xi32, #tpu.memory_space<vmem>>, %arg4: memref<8x2x128xf32, #tpu.memory_space<vmem>>, %arg5: memref<2x128xf32, #tpu.memory_space<vmem>>, %arg6: memref<2x128xf32, #tpu.memory_space<vmem>>) attributes {dimension_semantics = [#tpu.dimension_semantics<arbitrary>], iteration_bounds = array<i64: 1>, scalar_prefetch = 0 : i64, scratch_operands = 2 : i64, tpu.core_type = #tpu.core_type<tc>, window_params = [{transform_indices = @transform_0, window_bounds = array<i64: 8, 2, 512>}, {pipeline_mode = #tpu.pipeline_mode<synchronous>, transform_indices = @transform_1, window_bounds = array<i64: 128, 512>}, {pipeline_mode = #tpu.pipeline_mode<synchronous>, transform_indices = @transform_2, window_bounds = array<i64: 2, 1>}, {transform_indices = @transform_3, window_bounds = array<i64: 8, 2, 128>}]} {
    %c0_i32 = arith.constant 0 : i32
    %0 = arith.cmpi eq, %arg0, %c0_i32 : i32
    %1 = arith.extui %0 : i1 to i32
    %c0_i32_0 = arith.constant 0 : i32
    %2 = arith.cmpi ne, %1, %c0_i32_0 : i32
    scf.if %2 {
      %cst_85 = arith.constant 0.000000e+00 : f32
      %338 = vector.broadcast %cst_85 : f32 to vector<2x128xf32>
      %c0_86 = arith.constant 0 : index
      %c0_87 = arith.constant 0 : index
      %339 = vector.load %arg5[%c0_86, %c0_87] : memref<2x128xf32, #tpu.memory_space<vmem>>, vector<2x128xf32>
      tpu.vector_store %arg5[%c0_86, %c0_87], %338 {strides = array<i32>} : memref<2x128xf32, #tpu.memory_space<vmem>>, vector<2x128xf32>,
      %cst_88 = arith.constant 0.000000e+00 : f32
      %340 = vector.broadcast %cst_88 : f32 to vector<2x128xf32>
      %c0_89 = arith.constant 0 : index
      %c0_90 = arith.constant 0 : index
      %341 = vector.load %arg6[%c0_89, %c0_90] : memref<2x128xf32, #tpu.memory_space<vmem>>, vector<2x128xf32>
      tpu.vector_store %arg6[%c0_89, %c0_90], %340 {strides = array<i32>} : memref<2x128xf32, #tpu.memory_space<vmem>>, vector<2x128xf32>,
    } else {
    }
    %c0 = arith.constant 0 : index
    %c0_1 = arith.constant 0 : index
    %3 = vector.load %arg2[%c0, %c0_1] : memref<128x512xf32, #tpu.memory_space<vmem>>, vector<128x512xf32>
    %c0_2 = arith.constant 0 : index
    %c0_3 = arith.constant 0 : index
    %4 = vector.load %arg3[%c0_2, %c0_3] : memref<2x1xi32, #tpu.memory_space<vmem>>, vector<2x1xi32>
    %c8_i32 = arith.constant 8 : i32
    %5 = arith.muli %arg0, %c8_i32 : i32
    %c0_4 = arith.constant 0 : index
    %c0_5 = arith.constant 0 : index
    %6 = vector.load %arg5[%c0_4, %c0_5] : memref<2x128xf32, #tpu.memory_space<vmem>>, vector<2x128xf32>
    %c0_6 = arith.constant 0 : index
    %c0_7 = arith.constant 0 : index
    %7 = vector.load %arg6[%c0_6, %c0_7] : memref<2x128xf32, #tpu.memory_space<vmem>>, vector<2x128xf32>
    %c0_i32_8 = arith.constant 0 : i32
    %8 = arith.index_cast %c0_i32_8 : i32 to index
    %c0_9 = arith.constant 0 : index
    %c0_10 = arith.constant 0 : index
    %9 = vector.load %arg1[%8, %c0_9, %c0_10] : memref<8x2x512xf32, #tpu.memory_space<vmem>>, vector<1x2x512xf32>
    %10 = vector.shape_cast %9 : vector<1x2x512xf32> to vector<2x512xf32>
    %cst = arith.constant dense<0.000000e+00> : vector<2x512xf32>
    %11 = tpu.matmul %6, %3, %cst {dimension_numbers = #tpu.dot_dimension_numbers<[1], [0], [0], [1], [0, 0, 1, 1], [], []>} : vector<2x128xf32>, vector<128x512xf32>, vector<2x512xf32> -> vector<2x512xf32>
    %12 = arith.addf %10, %11 : vector<2x512xf32>
    %13 = vector.extract_strided_slice %12 {offsets = [0, 0], sizes = [2, 128], strides = [1, 1]} : vector<2x512xf32> to vector<2x128xf32>
    %14 = arith.negf %13 : vector<2x128xf32>
    %15 = math.exp %14 : vector<2x128xf32>
    %cst_11 = arith.constant 1.000000e+00 : f32
    %16 = vector.broadcast %cst_11 : f32 to vector<2x128xf32>
    %17 = arith.addf %16, %15 : vector<2x128xf32>
    %18 = arith.divf %16, %17 : vector<2x128xf32>
    %19 = vector.extract_strided_slice %12 {offsets = [0, 128], sizes = [2, 128], strides = [1, 1]} : vector<2x512xf32> to vector<2x128xf32>
    %20 = arith.negf %19 : vector<2x128xf32>
    %21 = math.exp %20 : vector<2x128xf32>
    %cst_12 = arith.constant 1.000000e+00 : f32
    %22 = vector.broadcast %cst_12 : f32 to vector<2x128xf32>
    %23 = arith.addf %22, %21 : vector<2x128xf32>
    %24 = arith.divf %22, %23 : vector<2x128xf32>
    %25 = vector.extract_strided_slice %12 {offsets = [0, 256], sizes = [2, 128], strides = [1, 1]} : vector<2x512xf32> to vector<2x128xf32>
    %26 = math.tanh %25 : vector<2x128xf32>
    %27 = vector.extract_strided_slice %12 {offsets = [0, 384], sizes = [2, 128], strides = [1, 1]} : vector<2x512xf32> to vector<2x128xf32>
    %28 = arith.negf %27 : vector<2x128xf32>
    %29 = math.exp %28 : vector<2x128xf32>
    %cst_13 = arith.constant 1.000000e+00 : f32
    %30 = vector.broadcast %cst_13 : f32 to vector<2x128xf32>
    %31 = arith.addf %30, %29 : vector<2x128xf32>
    %32 = arith.divf %30, %31 : vector<2x128xf32>
    %33 = arith.mulf %24, %7 : vector<2x128xf32>
    %34 = arith.mulf %18, %26 : vector<2x128xf32>
    %35 = arith.addf %33, %34 : vector<2x128xf32>
    %36 = math.tanh %35 : vector<2x128xf32>
    %37 = arith.mulf %32, %36 : vector<2x128xf32>
    %38 = arith.addi %5, %c0_i32_8 : i32
    %39 = vector.broadcast %38 : i32 to vector<2x1xi32>
    %40 = arith.cmpi slt, %39, %4 : vector<2x1xi32>
    %cst_14 = arith.constant 0.000000e+00 : f32
    %41 = vector.shape_cast %40 : vector<2x1xi1> to vector<2x1xi1>
    %42 = vector.broadcast %41 : vector<2x1xi1> to vector<2x128xi1>
    %43 = vector.broadcast %cst_14 : f32 to vector<2x128xf32>
    %44 = arith.select %42, %37, %43 : vector<2x128xi1>, vector<2x128xf32>
    %45 = arith.index_cast %c0_i32_8 : i32 to index
    %c0_15 = arith.constant 0 : index
    %c0_16 = arith.constant 0 : index
    %46 = vector.load %arg4[%45, %c0_15, %c0_16] : memref<8x2x128xf32, #tpu.memory_space<vmem>>, vector<1x2x128xf32>
    %47 = vector.shape_cast %46 : vector<1x2x128xf32> to vector<2x128xf32>
    %48 = vector.shape_cast %44 : vector<2x128xf32> to vector<1x2x128xf32>
    tpu.vector_store %arg4[%45, %c0_15, %c0_16], %48 {strides = array<i32>} : memref<8x2x128xf32, #tpu.memory_space<vmem>>, vector<1x2x128xf32>,
    %c1_i32 = arith.constant 1 : i32
    %49 = arith.index_cast %c1_i32 : i32 to index
    %c0_17 = arith.constant 0 : index
    %c0_18 = arith.constant 0 : index
    %50 = vector.load %arg1[%49, %c0_17, %c0_18] : memref<8x2x512xf32, #tpu.memory_space<vmem>>, vector<1x2x512xf32>
    %51 = vector.shape_cast %50 : vector<1x2x512xf32> to vector<2x512xf32>
    %cst_19 = arith.constant dense<0.000000e+00> : vector<2x512xf32>
    %52 = tpu.matmul %37, %3, %cst_19 {dimension_numbers = #tpu.dot_dimension_numbers<[1], [0], [0], [1], [0, 0, 1, 1], [], []>} : vector<2x128xf32>, vector<128x512xf32>, vector<2x512xf32> -> vector<2x512xf32>
    %53 = arith.addf %51, %52 : vector<2x512xf32>
    %54 = vector.extract_strided_slice %53 {offsets = [0, 0], sizes = [2, 128], strides = [1, 1]} : vector<2x512xf32> to vector<2x128xf32>
    %55 = arith.negf %54 : vector<2x128xf32>
    %56 = math.exp %55 : vector<2x128xf32>
    %cst_20 = arith.constant 1.000000e+00 : f32
    %57 = vector.broadcast %cst_20 : f32 to vector<2x128xf32>
    %58 = arith.addf %57, %56 : vector<2x128xf32>
    %59 = arith.divf %57, %58 : vector<2x128xf32>
    %60 = vector.extract_strided_slice %53 {offsets = [0, 128], sizes = [2, 128], strides = [1, 1]} : vector<2x512xf32> to vector<2x128xf32>
    %61 = arith.negf %60 : vector<2x128xf32>
    %62 = math.exp %61 : vector<2x128xf32>
    %cst_21 = arith.constant 1.000000e+00 : f32
    %63 = vector.broadcast %cst_21 : f32 to vector<2x128xf32>
    %64 = arith.addf %63, %62 : vector<2x128xf32>
    %65 = arith.divf %63, %64 : vector<2x128xf32>
    %66 = vector.extract_strided_slice %53 {offsets = [0, 256], sizes = [2, 128], strides = [1, 1]} : vector<2x512xf32> to vector<2x128xf32>
    %67 = math.tanh %66 : vector<2x128xf32>
    %68 = vector.extract_strided_slice %53 {offsets = [0, 384], sizes = [2, 128], strides = [1, 1]} : vector<2x512xf32> to vector<2x128xf32>
    %69 = arith.negf %68 : vector<2x128xf32>
    %70 = math.exp %69 : vector<2x128xf32>
    %cst_22 = arith.constant 1.000000e+00 : f32
    %71 = vector.broadcast %cst_22 : f32 to vector<2x128xf32>
    %72 = arith.addf %71, %70 : vector<2x128xf32>
    %73 = arith.divf %71, %72 : vector<2x128xf32>
    %74 = arith.mulf %65, %35 : vector<2x128xf32>
    %75 = arith.mulf %59, %67 : vector<2x128xf32>
    %76 = arith.addf %74, %75 : vector<2x128xf32>
    %77 = math.tanh %76 : vector<2x128xf32>
    %78 = arith.mulf %73, %77 : vector<2x128xf32>
    %79 = arith.addi %5, %c1_i32 : i32
    %80 = vector.broadcast %79 : i32 to vector<2x1xi32>
    %81 = arith.cmpi slt, %80, %4 : vector<2x1xi32>
    %cst_23 = arith.constant 0.000000e+00 : f32
    %82 = vector.shape_cast %81 : vector<2x1xi1> to vector<2x1xi1>
    %83 = vector.broadcast %82 : vector<2x1xi1> to vector<2x128xi1>
    %84 = vector.broadcast %cst_23 : f32 to vector<2x128xf32>
    %85 = arith.select %83, %78, %84 : vector<2x128xi1>, vector<2x128xf32>
    %86 = arith.index_cast %c1_i32 : i32 to index
    %c0_24 = arith.constant 0 : index
    %c0_25 = arith.constant 0 : index
    %87 = vector.load %arg4[%86, %c0_24, %c0_25] : memref<8x2x128xf32, #tpu.memory_space<vmem>>, vector<1x2x128xf32>
    %88 = vector.shape_cast %87 : vector<1x2x128xf32> to vector<2x128xf32>
    %89 = vector.shape_cast %85 : vector<2x128xf32> to vector<1x2x128xf32>
    tpu.vector_store %arg4[%86, %c0_24, %c0_25], %89 {strides = array<i32>} : memref<8x2x128xf32, #tpu.memory_space<vmem>>, vector<1x2x128xf32>,
    %c2_i32 = arith.constant 2 : i32
    %90 = arith.index_cast %c2_i32 : i32 to index
    %c0_26 = arith.constant 0 : index
    %c0_27 = arith.constant 0 : index
    %91 = vector.load %arg1[%90, %c0_26, %c0_27] : memref<8x2x512xf32, #tpu.memory_space<vmem>>, vector<1x2x512xf32>
    %92 = vector.shape_cast %91 : vector<1x2x512xf32> to vector<2x512xf32>
    %cst_28 = arith.constant dense<0.000000e+00> : vector<2x512xf32>
    %93 = tpu.matmul %78, %3, %cst_28 {dimension_numbers = #tpu.dot_dimension_numbers<[1], [0], [0], [1], [0, 0, 1, 1], [], []>} : vector<2x128xf32>, vector<128x512xf32>, vector<2x512xf32> -> vector<2x512xf32>
    %94 = arith.addf %92, %93 : vector<2x512xf32>
    %95 = vector.extract_strided_slice %94 {offsets = [0, 0], sizes = [2, 128], strides = [1, 1]} : vector<2x512xf32> to vector<2x128xf32>
    %96 = arith.negf %95 : vector<2x128xf32>
    %97 = math.exp %96 : vector<2x128xf32>
    %cst_29 = arith.constant 1.000000e+00 : f32
    %98 = vector.broadcast %cst_29 : f32 to vector<2x128xf32>
    %99 = arith.addf %98, %97 : vector<2x128xf32>
    %100 = arith.divf %98, %99 : vector<2x128xf32>
    %101 = vector.extract_strided_slice %94 {offsets = [0, 128], sizes = [2, 128], strides = [1, 1]} : vector<2x512xf32> to vector<2x128xf32>
    %102 = arith.negf %101 : vector<2x128xf32>
    %103 = math.exp %102 : vector<2x128xf32>
    %cst_30 = arith.constant 1.000000e+00 : f32
    %104 = vector.broadcast %cst_30 : f32 to vector<2x128xf32>
    %105 = arith.addf %104, %103 : vector<2x128xf32>
    %106 = arith.divf %104, %105 : vector<2x128xf32>
    %107 = vector.extract_strided_slice %94 {offsets = [0, 256], sizes = [2, 128], strides = [1, 1]} : vector<2x512xf32> to vector<2x128xf32>
    %108 = math.tanh %107 : vector<2x128xf32>
    %109 = vector.extract_strided_slice %94 {offsets = [0, 384], sizes = [2, 128], strides = [1, 1]} : vector<2x512xf32> to vector<2x128xf32>
    %110 = arith.negf %109 : vector<2x128xf32>
    %111 = math.exp %110 : vector<2x128xf32>
    %cst_31 = arith.constant 1.000000e+00 : f32
    %112 = vector.broadcast %cst_31 : f32 to vector<2x128xf32>
    %113 = arith.addf %112, %111 : vector<2x128xf32>
    %114 = arith.divf %112, %113 : vector<2x128xf32>
    %115 = arith.mulf %106, %76 : vector<2x128xf32>
    %116 = arith.mulf %100, %108 : vector<2x128xf32>
    %117 = arith.addf %115, %116 : vector<2x128xf32>
    %118 = math.tanh %117 : vector<2x128xf32>
    %119 = arith.mulf %114, %118 : vector<2x128xf32>
    %120 = arith.addi %5, %c2_i32 : i32
    %121 = vector.broadcast %120 : i32 to vector<2x1xi32>
    %122 = arith.cmpi slt, %121, %4 : vector<2x1xi32>
    %cst_32 = arith.constant 0.000000e+00 : f32
    %123 = vector.shape_cast %122 : vector<2x1xi1> to vector<2x1xi1>
    %124 = vector.broadcast %123 : vector<2x1xi1> to vector<2x128xi1>
    %125 = vector.broadcast %cst_32 : f32 to vector<2x128xf32>
    %126 = arith.select %124, %119, %125 : vector<2x128xi1>, vector<2x128xf32>
    %127 = arith.index_cast %c2_i32 : i32 to index
    %c0_33 = arith.constant 0 : index
    %c0_34 = arith.constant 0 : index
    %128 = vector.load %arg4[%127, %c0_33, %c0_34] : memref<8x2x128xf32, #tpu.memory_space<vmem>>, vector<1x2x128xf32>
    %129 = vector.shape_cast %128 : vector<1x2x128xf32> to vector<2x128xf32>
    %130 = vector.shape_cast %126 : vector<2x128xf32> to vector<1x2x128xf32>
    tpu.vector_store %arg4[%127, %c0_33, %c0_34], %130 {strides = array<i32>} : memref<8x2x128xf32, #tpu.memory_space<vmem>>, vector<1x2x128xf32>,
    %c3_i32 = arith.constant 3 : i32
    %131 = arith.index_cast %c3_i32 : i32 to index
    %c0_35 = arith.constant 0 : index
    %c0_36 = arith.constant 0 : index
    %132 = vector.load %arg1[%131, %c0_35, %c0_36] : memref<8x2x512xf32, #tpu.memory_space<vmem>>, vector<1x2x512xf32>
    %133 = vector.shape_cast %132 : vector<1x2x512xf32> to vector<2x512xf32>
    %cst_37 = arith.constant dense<0.000000e+00> : vector<2x512xf32>
    %134 = tpu.matmul %119, %3, %cst_37 {dimension_numbers = #tpu.dot_dimension_numbers<[1], [0], [0], [1], [0, 0, 1, 1], [], []>} : vector<2x128xf32>, vector<128x512xf32>, vector<2x512xf32> -> vector<2x512xf32>
    %135 = arith.addf %133, %134 : vector<2x512xf32>
    %136 = vector.extract_strided_slice %135 {offsets = [0, 0], sizes = [2, 128], strides = [1, 1]} : vector<2x512xf32> to vector<2x128xf32>
    %137 = arith.negf %136 : vector<2x128xf32>
    %138 = math.exp %137 : vector<2x128xf32>
    %cst_38 = arith.constant 1.000000e+00 : f32
    %139 = vector.broadcast %cst_38 : f32 to vector<2x128xf32>
    %140 = arith.addf %139, %138 : vector<2x128xf32>
    %141 = arith.divf %139, %140 : vector<2x128xf32>
    %142 = vector.extract_strided_slice %135 {offsets = [0, 128], sizes = [2, 128], strides = [1, 1]} : vector<2x512xf32> to vector<2x128xf32>
    %143 = arith.negf %142 : vector<2x128xf32>
    %144 = math.exp %143 : vector<2x128xf32>
    %cst_39 = arith.constant 1.000000e+00 : f32
    %145 = vector.broadcast %cst_39 : f32 to vector<2x128xf32>
    %146 = arith.addf %145, %144 : vector<2x128xf32>
    %147 = arith.divf %145, %146 : vector<2x128xf32>
    %148 = vector.extract_strided_slice %135 {offsets = [0, 256], sizes = [2, 128], strides = [1, 1]} : vector<2x512xf32> to vector<2x128xf32>
    %149 = math.tanh %148 : vector<2x128xf32>
    %150 = vector.extract_strided_slice %135 {offsets = [0, 384], sizes = [2, 128], strides = [1, 1]} : vector<2x512xf32> to vector<2x128xf32>
    %151 = arith.negf %150 : vector<2x128xf32>
    %152 = math.exp %151 : vector<2x128xf32>
    %cst_40 = arith.constant 1.000000e+00 : f32
    %153 = vector.broadcast %cst_40 : f32 to vector<2x128xf32>
    %154 = arith.addf %153, %152 : vector<2x128xf32>
    %155 = arith.divf %153, %154 : vector<2x128xf32>
    %156 = arith.mulf %147, %117 : vector<2x128xf32>
    %157 = arith.mulf %141, %149 : vector<2x128xf32>
    %158 = arith.addf %156, %157 : vector<2x128xf32>
    %159 = math.tanh %158 : vector<2x128xf32>
    %160 = arith.mulf %155, %159 : vector<2x128xf32>
    %161 = arith.addi %5, %c3_i32 : i32
    %162 = vector.broadcast %161 : i32 to vector<2x1xi32>
    %163 = arith.cmpi slt, %162, %4 : vector<2x1xi32>
    %cst_41 = arith.constant 0.000000e+00 : f32
    %164 = vector.shape_cast %163 : vector<2x1xi1> to vector<2x1xi1>
    %165 = vector.broadcast %164 : vector<2x1xi1> to vector<2x128xi1>
    %166 = vector.broadcast %cst_41 : f32 to vector<2x128xf32>
    %167 = arith.select %165, %160, %166 : vector<2x128xi1>, vector<2x128xf32>
    %168 = arith.index_cast %c3_i32 : i32 to index
    %c0_42 = arith.constant 0 : index
    %c0_43 = arith.constant 0 : index
    %169 = vector.load %arg4[%168, %c0_42, %c0_43] : memref<8x2x128xf32, #tpu.memory_space<vmem>>, vector<1x2x128xf32>
    %170 = vector.shape_cast %169 : vector<1x2x128xf32> to vector<2x128xf32>
    %171 = vector.shape_cast %167 : vector<2x128xf32> to vector<1x2x128xf32>
    tpu.vector_store %arg4[%168, %c0_42, %c0_43], %171 {strides = array<i32>} : memref<8x2x128xf32, #tpu.memory_space<vmem>>, vector<1x2x128xf32>,
    %c4_i32 = arith.constant 4 : i32
    %172 = arith.index_cast %c4_i32 : i32 to index
    %c0_44 = arith.constant 0 : index
    %c0_45 = arith.constant 0 : index
    %173 = vector.load %arg1[%172, %c0_44, %c0_45] : memref<8x2x512xf32, #tpu.memory_space<vmem>>, vector<1x2x512xf32>
    %174 = vector.shape_cast %173 : vector<1x2x512xf32> to vector<2x512xf32>
    %cst_46 = arith.constant dense<0.000000e+00> : vector<2x512xf32>
    %175 = tpu.matmul %160, %3, %cst_46 {dimension_numbers = #tpu.dot_dimension_numbers<[1], [0], [0], [1], [0, 0, 1, 1], [], []>} : vector<2x128xf32>, vector<128x512xf32>, vector<2x512xf32> -> vector<2x512xf32>
    %176 = arith.addf %174, %175 : vector<2x512xf32>
    %177 = vector.extract_strided_slice %176 {offsets = [0, 0], sizes = [2, 128], strides = [1, 1]} : vector<2x512xf32> to vector<2x128xf32>
    %178 = arith.negf %177 : vector<2x128xf32>
    %179 = math.exp %178 : vector<2x128xf32>
    %cst_47 = arith.constant 1.000000e+00 : f32
    %180 = vector.broadcast %cst_47 : f32 to vector<2x128xf32>
    %181 = arith.addf %180, %179 : vector<2x128xf32>
    %182 = arith.divf %180, %181 : vector<2x128xf32>
    %183 = vector.extract_strided_slice %176 {offsets = [0, 128], sizes = [2, 128], strides = [1, 1]} : vector<2x512xf32> to vector<2x128xf32>
    %184 = arith.negf %183 : vector<2x128xf32>
    %185 = math.exp %184 : vector<2x128xf32>
    %cst_48 = arith.constant 1.000000e+00 : f32
    %186 = vector.broadcast %cst_48 : f32 to vector<2x128xf32>
    %187 = arith.addf %186, %185 : vector<2x128xf32>
    %188 = arith.divf %186, %187 : vector<2x128xf32>
    %189 = vector.extract_strided_slice %176 {offsets = [0, 256], sizes = [2, 128], strides = [1, 1]} : vector<2x512xf32> to vector<2x128xf32>
    %190 = math.tanh %189 : vector<2x128xf32>
    %191 = vector.extract_strided_slice %176 {offsets = [0, 384], sizes = [2, 128], strides = [1, 1]} : vector<2x512xf32> to vector<2x128xf32>
    %192 = arith.negf %191 : vector<2x128xf32>
    %193 = math.exp %192 : vector<2x128xf32>
    %cst_49 = arith.constant 1.000000e+00 : f32
    %194 = vector.broadcast %cst_49 : f32 to vector<2x128xf32>
    %195 = arith.addf %194, %193 : vector<2x128xf32>
    %196 = arith.divf %194, %195 : vector<2x128xf32>
    %197 = arith.mulf %188, %158 : vector<2x128xf32>
    %198 = arith.mulf %182, %190 : vector<2x128xf32>
    %199 = arith.addf %197, %198 : vector<2x128xf32>
    %200 = math.tanh %199 : vector<2x128xf32>
    %201 = arith.mulf %196, %200 : vector<2x128xf32>
    %202 = arith.addi %5, %c4_i32 : i32
    %203 = vector.broadcast %202 : i32 to vector<2x1xi32>
    %204 = arith.cmpi slt, %203, %4 : vector<2x1xi32>
    %cst_50 = arith.constant 0.000000e+00 : f32
    %205 = vector.shape_cast %204 : vector<2x1xi1> to vector<2x1xi1>
    %206 = vector.broadcast %205 : vector<2x1xi1> to vector<2x128xi1>
    %207 = vector.broadcast %cst_50 : f32 to vector<2x128xf32>
    %208 = arith.select %206, %201, %207 : vector<2x128xi1>, vector<2x128xf32>
    %209 = arith.index_cast %c4_i32 : i32 to index
    %c0_51 = arith.constant 0 : index
    %c0_52 = arith.constant 0 : index
    %210 = vector.load %arg4[%209, %c0_51, %c0_52] : memref<8x2x128xf32, #tpu.memory_space<vmem>>, vector<1x2x128xf32>
    %211 = vector.shape_cast %210 : vector<1x2x128xf32> to vector<2x128xf32>
    %212 = vector.shape_cast %208 : vector<2x128xf32> to vector<1x2x128xf32>
    tpu.vector_store %arg4[%209, %c0_51, %c0_52], %212 {strides = array<i32>} : memref<8x2x128xf32, #tpu.memory_space<vmem>>, vector<1x2x128xf32>,
    %c5_i32 = arith.constant 5 : i32
    %213 = arith.index_cast %c5_i32 : i32 to index
    %c0_53 = arith.constant 0 : index
    %c0_54 = arith.constant 0 : index
    %214 = vector.load %arg1[%213, %c0_53, %c0_54] : memref<8x2x512xf32, #tpu.memory_space<vmem>>, vector<1x2x512xf32>
    %215 = vector.shape_cast %214 : vector<1x2x512xf32> to vector<2x512xf32>
    %cst_55 = arith.constant dense<0.000000e+00> : vector<2x512xf32>
    %216 = tpu.matmul %201, %3, %cst_55 {dimension_numbers = #tpu.dot_dimension_numbers<[1], [0], [0], [1], [0, 0, 1, 1], [], []>} : vector<2x128xf32>, vector<128x512xf32>, vector<2x512xf32> -> vector<2x512xf32>
    %217 = arith.addf %215, %216 : vector<2x512xf32>
    %218 = vector.extract_strided_slice %217 {offsets = [0, 0], sizes = [2, 128], strides = [1, 1]} : vector<2x512xf32> to vector<2x128xf32>
    %219 = arith.negf %218 : vector<2x128xf32>
    %220 = math.exp %219 : vector<2x128xf32>
    %cst_56 = arith.constant 1.000000e+00 : f32
    %221 = vector.broadcast %cst_56 : f32 to vector<2x128xf32>
    %222 = arith.addf %221, %220 : vector<2x128xf32>
    %223 = arith.divf %221, %222 : vector<2x128xf32>
    %224 = vector.extract_strided_slice %217 {offsets = [0, 128], sizes = [2, 128], strides = [1, 1]} : vector<2x512xf32> to vector<2x128xf32>
    %225 = arith.negf %224 : vector<2x128xf32>
    %226 = math.exp %225 : vector<2x128xf32>
    %cst_57 = arith.constant 1.000000e+00 : f32
    %227 = vector.broadcast %cst_57 : f32 to vector<2x128xf32>
    %228 = arith.addf %227, %226 : vector<2x128xf32>
    %229 = arith.divf %227, %228 : vector<2x128xf32>
    %230 = vector.extract_strided_slice %217 {offsets = [0, 256], sizes = [2, 128], strides = [1, 1]} : vector<2x512xf32> to vector<2x128xf32>
    %231 = math.tanh %230 : vector<2x128xf32>
    %232 = vector.extract_strided_slice %217 {offsets = [0, 384], sizes = [2, 128], strides = [1, 1]} : vector<2x512xf32> to vector<2x128xf32>
    %233 = arith.negf %232 : vector<2x128xf32>
    %234 = math.exp %233 : vector<2x128xf32>
    %cst_58 = arith.constant 1.000000e+00 : f32
    %235 = vector.broadcast %cst_58 : f32 to vector<2x128xf32>
    %236 = arith.addf %235, %234 : vector<2x128xf32>
    %237 = arith.divf %235, %236 : vector<2x128xf32>
    %238 = arith.mulf %229, %199 : vector<2x128xf32>
    %239 = arith.mulf %223, %231 : vector<2x128xf32>
    %240 = arith.addf %238, %239 : vector<2x128xf32>
    %241 = math.tanh %240 : vector<2x128xf32>
    %242 = arith.mulf %237, %241 : vector<2x128xf32>
    %243 = arith.addi %5, %c5_i32 : i32
    %244 = vector.broadcast %243 : i32 to vector<2x1xi32>
    %245 = arith.cmpi slt, %244, %4 : vector<2x1xi32>
    %cst_59 = arith.constant 0.000000e+00 : f32
    %246 = vector.shape_cast %245 : vector<2x1xi1> to vector<2x1xi1>
    %247 = vector.broadcast %246 : vector<2x1xi1> to vector<2x128xi1>
    %248 = vector.broadcast %cst_59 : f32 to vector<2x128xf32>
    %249 = arith.select %247, %242, %248 : vector<2x128xi1>, vector<2x128xf32>
    %250 = arith.index_cast %c5_i32 : i32 to index
    %c0_60 = arith.constant 0 : index
    %c0_61 = arith.constant 0 : index
    %251 = vector.load %arg4[%250, %c0_60, %c0_61] : memref<8x2x128xf32, #tpu.memory_space<vmem>>, vector<1x2x128xf32>
    %252 = vector.shape_cast %251 : vector<1x2x128xf32> to vector<2x128xf32>
    %253 = vector.shape_cast %249 : vector<2x128xf32> to vector<1x2x128xf32>
    tpu.vector_store %arg4[%250, %c0_60, %c0_61], %253 {strides = array<i32>} : memref<8x2x128xf32, #tpu.memory_space<vmem>>, vector<1x2x128xf32>,
    %c6_i32 = arith.constant 6 : i32
    %254 = arith.index_cast %c6_i32 : i32 to index
    %c0_62 = arith.constant 0 : index
    %c0_63 = arith.constant 0 : index
    %255 = vector.load %arg1[%254, %c0_62, %c0_63] : memref<8x2x512xf32, #tpu.memory_space<vmem>>, vector<1x2x512xf32>
    %256 = vector.shape_cast %255 : vector<1x2x512xf32> to vector<2x512xf32>
    %cst_64 = arith.constant dense<0.000000e+00> : vector<2x512xf32>
    %257 = tpu.matmul %242, %3, %cst_64 {dimension_numbers = #tpu.dot_dimension_numbers<[1], [0], [0], [1], [0, 0, 1, 1], [], []>} : vector<2x128xf32>, vector<128x512xf32>, vector<2x512xf32> -> vector<2x512xf32>
    %258 = arith.addf %256, %257 : vector<2x512xf32>
    %259 = vector.extract_strided_slice %258 {offsets = [0, 0], sizes = [2, 128], strides = [1, 1]} : vector<2x512xf32> to vector<2x128xf32>
    %260 = arith.negf %259 : vector<2x128xf32>
    %261 = math.exp %260 : vector<2x128xf32>
    %cst_65 = arith.constant 1.000000e+00 : f32
    %262 = vector.broadcast %cst_65 : f32 to vector<2x128xf32>
    %263 = arith.addf %262, %261 : vector<2x128xf32>
    %264 = arith.divf %262, %263 : vector<2x128xf32>
    %265 = vector.extract_strided_slice %258 {offsets = [0, 128], sizes = [2, 128], strides = [1, 1]} : vector<2x512xf32> to vector<2x128xf32>
    %266 = arith.negf %265 : vector<2x128xf32>
    %267 = math.exp %266 : vector<2x128xf32>
    %cst_66 = arith.constant 1.000000e+00 : f32
    %268 = vector.broadcast %cst_66 : f32 to vector<2x128xf32>
    %269 = arith.addf %268, %267 : vector<2x128xf32>
    %270 = arith.divf %268, %269 : vector<2x128xf32>
    %271 = vector.extract_strided_slice %258 {offsets = [0, 256], sizes = [2, 128], strides = [1, 1]} : vector<2x512xf32> to vector<2x128xf32>
    %272 = math.tanh %271 : vector<2x128xf32>
    %273 = vector.extract_strided_slice %258 {offsets = [0, 384], sizes = [2, 128], strides = [1, 1]} : vector<2x512xf32> to vector<2x128xf32>
    %274 = arith.negf %273 : vector<2x128xf32>
    %275 = math.exp %274 : vector<2x128xf32>
    %cst_67 = arith.constant 1.000000e+00 : f32
    %276 = vector.broadcast %cst_67 : f32 to vector<2x128xf32>
    %277 = arith.addf %276, %275 : vector<2x128xf32>
    %278 = arith.divf %276, %277 : vector<2x128xf32>
    %279 = arith.mulf %270, %240 : vector<2x128xf32>
    %280 = arith.mulf %264, %272 : vector<2x128xf32>
    %281 = arith.addf %279, %280 : vector<2x128xf32>
    %282 = math.tanh %281 : vector<2x128xf32>
    %283 = arith.mulf %278, %282 : vector<2x128xf32>
    %284 = arith.addi %5, %c6_i32 : i32
    %285 = vector.broadcast %284 : i32 to vector<2x1xi32>
    %286 = arith.cmpi slt, %285, %4 : vector<2x1xi32>
    %cst_68 = arith.constant 0.000000e+00 : f32
    %287 = vector.shape_cast %286 : vector<2x1xi1> to vector<2x1xi1>
    %288 = vector.broadcast %287 : vector<2x1xi1> to vector<2x128xi1>
    %289 = vector.broadcast %cst_68 : f32 to vector<2x128xf32>
    %290 = arith.select %288, %283, %289 : vector<2x128xi1>, vector<2x128xf32>
    %291 = arith.index_cast %c6_i32 : i32 to index
    %c0_69 = arith.constant 0 : index
    %c0_70 = arith.constant 0 : index
    %292 = vector.load %arg4[%291, %c0_69, %c0_70] : memref<8x2x128xf32, #tpu.memory_space<vmem>>, vector<1x2x128xf32>
    %293 = vector.shape_cast %292 : vector<1x2x128xf32> to vector<2x128xf32>
    %294 = vector.shape_cast %290 : vector<2x128xf32> to vector<1x2x128xf32>
    tpu.vector_store %arg4[%291, %c0_69, %c0_70], %294 {strides = array<i32>} : memref<8x2x128xf32, #tpu.memory_space<vmem>>, vector<1x2x128xf32>,
    %c7_i32 = arith.constant 7 : i32
    %295 = arith.index_cast %c7_i32 : i32 to index
    %c0_71 = arith.constant 0 : index
    %c0_72 = arith.constant 0 : index
    %296 = vector.load %arg1[%295, %c0_71, %c0_72] : memref<8x2x512xf32, #tpu.memory_space<vmem>>, vector<1x2x512xf32>
    %297 = vector.shape_cast %296 : vector<1x2x512xf32> to vector<2x512xf32>
    %cst_73 = arith.constant dense<0.000000e+00> : vector<2x512xf32>
    %298 = tpu.matmul %283, %3, %cst_73 {dimension_numbers = #tpu.dot_dimension_numbers<[1], [0], [0], [1], [0, 0, 1, 1], [], []>} : vector<2x128xf32>, vector<128x512xf32>, vector<2x512xf32> -> vector<2x512xf32>
    %299 = arith.addf %297, %298 : vector<2x512xf32>
    %300 = vector.extract_strided_slice %299 {offsets = [0, 0], sizes = [2, 128], strides = [1, 1]} : vector<2x512xf32> to vector<2x128xf32>
    %301 = arith.negf %300 : vector<2x128xf32>
    %302 = math.exp %301 : vector<2x128xf32>
    %cst_74 = arith.constant 1.000000e+00 : f32
    %303 = vector.broadcast %cst_74 : f32 to vector<2x128xf32>
    %304 = arith.addf %303, %302 : vector<2x128xf32>
    %305 = arith.divf %303, %304 : vector<2x128xf32>
    %306 = vector.extract_strided_slice %299 {offsets = [0, 128], sizes = [2, 128], strides = [1, 1]} : vector<2x512xf32> to vector<2x128xf32>
    %307 = arith.negf %306 : vector<2x128xf32>
    %308 = math.exp %307 : vector<2x128xf32>
    %cst_75 = arith.constant 1.000000e+00 : f32
    %309 = vector.broadcast %cst_75 : f32 to vector<2x128xf32>
    %310 = arith.addf %309, %308 : vector<2x128xf32>
    %311 = arith.divf %309, %310 : vector<2x128xf32>
    %312 = vector.extract_strided_slice %299 {offsets = [0, 256], sizes = [2, 128], strides = [1, 1]} : vector<2x512xf32> to vector<2x128xf32>
    %313 = math.tanh %312 : vector<2x128xf32>
    %314 = vector.extract_strided_slice %299 {offsets = [0, 384], sizes = [2, 128], strides = [1, 1]} : vector<2x512xf32> to vector<2x128xf32>
    %315 = arith.negf %314 : vector<2x128xf32>
    %316 = math.exp %315 : vector<2x128xf32>
    %cst_76 = arith.constant 1.000000e+00 : f32
    %317 = vector.broadcast %cst_76 : f32 to vector<2x128xf32>
    %318 = arith.addf %317, %316 : vector<2x128xf32>
    %319 = arith.divf %317, %318 : vector<2x128xf32>
    %320 = arith.mulf %311, %281 : vector<2x128xf32>
    %321 = arith.mulf %305, %313 : vector<2x128xf32>
    %322 = arith.addf %320, %321 : vector<2x128xf32>
    %323 = math.tanh %322 : vector<2x128xf32>
    %324 = arith.mulf %319, %323 : vector<2x128xf32>
    %325 = arith.addi %5, %c7_i32 : i32
    %326 = vector.broadcast %325 : i32 to vector<2x1xi32>
    %327 = arith.cmpi slt, %326, %4 : vector<2x1xi32>
    %cst_77 = arith.constant 0.000000e+00 : f32
    %328 = vector.shape_cast %327 : vector<2x1xi1> to vector<2x1xi1>
    %329 = vector.broadcast %328 : vector<2x1xi1> to vector<2x128xi1>
    %330 = vector.broadcast %cst_77 : f32 to vector<2x128xf32>
    %331 = arith.select %329, %324, %330 : vector<2x128xi1>, vector<2x128xf32>
    %332 = arith.index_cast %c7_i32 : i32 to index
    %c0_78 = arith.constant 0 : index
    %c0_79 = arith.constant 0 : index
    %333 = vector.load %arg4[%332, %c0_78, %c0_79] : memref<8x2x128xf32, #tpu.memory_space<vmem>>, vector<1x2x128xf32>
    %334 = vector.shape_cast %333 : vector<1x2x128xf32> to vector<2x128xf32>
    %335 = vector.shape_cast %331 : vector<2x128xf32> to vector<1x2x128xf32>
    tpu.vector_store %arg4[%332, %c0_78, %c0_79], %335 {strides = array<i32>} : memref<8x2x128xf32, #tpu.memory_space<vmem>>, vector<1x2x128xf32>,
    %c8_i32_80 = arith.constant 8 : i32
    %c0_81 = arith.constant 0 : index
    %c0_82 = arith.constant 0 : index
    %336 = vector.load %arg5[%c0_81, %c0_82] : memref<2x128xf32, #tpu.memory_space<vmem>>, vector<2x128xf32>
    tpu.vector_store %arg5[%c0_81, %c0_82], %324 {strides = array<i32>} : memref<2x128xf32, #tpu.memory_space<vmem>>, vector<2x128xf32>,
    %c0_83 = arith.constant 0 : index
    %c0_84 = arith.constant 0 : index
    %337 = vector.load %arg6[%c0_83, %c0_84] : memref<2x128xf32, #tpu.memory_space<vmem>>, vector<2x128xf32>
    tpu.vector_store %arg6[%c0_83, %c0_84], %322 {strides = array<i32>} : memref<2x128xf32, #tpu.memory_space<vmem>>, vector<2x128xf32>,
    return
  }
  func.func @transform_0(%arg0: i32) -> (i32, i32, i32) {
    %c0_i32 = arith.constant 0 : i32
    %c0_i32_0 = arith.constant 0 : i32
    %c0_i32_1 = arith.constant 0 : i32
    return %arg0, %c0_i32, %c0_i32_0 : i32, i32, i32
  }
  func.func @transform_1(%arg0: i32) -> (i32, i32) {
    %c0_i32 = arith.constant 0 : i32
    %c0_i32_0 = arith.constant 0 : i32
    %c0_i32_1 = arith.constant 0 : i32
    return %c0_i32, %c0_i32_0 : i32, i32
  }
  func.func @transform_2(%arg0: i32) -> (i32, i32) {
    %c0_i32 = arith.constant 0 : i32
    %c0_i32_0 = arith.constant 0 : i32
    %c0_i32_1 = arith.constant 0 : i32
    return %c0_i32, %c0_i32_0 : i32, i32
  }
  func.func @transform_3(%arg0: i32) -> (i32, i32, i32) {
    %c0_i32 = arith.constant 0 : i32
    %c0_i32_0 = arith.constant 0 : i32
    %c0_i32_1 = arith.constant 0 : i32
    return %arg0, %c0_i32, %c0_i32_0 : i32, i32, i32
  }
}

module attributes {stable_mosaic.version = 11 : i64} {
  func.func @_input_proj_kernel(%arg0: i32, %arg1: memref<16x16xf32, #tpu.memory_space<vmem>>, %arg2: memref<16x512xf32, #tpu.memory_space<vmem>>, %arg3: memref<1x512xf32, #tpu.memory_space<vmem>>, %arg4: memref<16x512xf32, #tpu.memory_space<vmem>>) attributes {dimension_semantics = [#tpu.dimension_semantics<parallel>], iteration_bounds = array<i64: 1>, scalar_prefetch = 0 : i64, scratch_operands = 0 : i64, tpu.core_type = #tpu.core_type<tc>, window_params = [{transform_indices = @transform_0, window_bounds = array<i64: 16, 16>}, {pipeline_mode = #tpu.pipeline_mode<synchronous>, transform_indices = @transform_1, window_bounds = array<i64: 16, 512>}, {pipeline_mode = #tpu.pipeline_mode<synchronous>, transform_indices = @transform_2, window_bounds = array<i64: 1, 512>}, {transform_indices = @transform_3, window_bounds = array<i64: 16, 512>}]} {
    %c0 = arith.constant 0 : index
    %c0_0 = arith.constant 0 : index
    %0 = vector.load %arg1[%c0, %c0_0] : memref<16x16xf32, #tpu.memory_space<vmem>>, vector<16x16xf32>
    %c0_1 = arith.constant 0 : index
    %c0_2 = arith.constant 0 : index
    %1 = vector.load %arg2[%c0_1, %c0_2] : memref<16x512xf32, #tpu.memory_space<vmem>>, vector<16x512xf32>
    %cst = arith.constant dense<0.000000e+00> : vector<16x512xf32>
    %2 = tpu.matmul %0, %1, %cst {dimension_numbers = #tpu.dot_dimension_numbers<[1], [0], [0], [1], [0, 0, 1, 1], [], []>} : vector<16x16xf32>, vector<16x512xf32>, vector<16x512xf32> -> vector<16x512xf32>
    %c0_3 = arith.constant 0 : index
    %c0_4 = arith.constant 0 : index
    %3 = vector.load %arg3[%c0_3, %c0_4] : memref<1x512xf32, #tpu.memory_space<vmem>>, vector<1x512xf32>
    %4 = vector.broadcast %3 : vector<1x512xf32> to vector<16x512xf32>
    %5 = arith.addf %2, %4 : vector<16x512xf32>
    %c0_5 = arith.constant 0 : index
    %c0_6 = arith.constant 0 : index
    %6 = vector.load %arg4[%c0_5, %c0_6] : memref<16x512xf32, #tpu.memory_space<vmem>>, vector<16x512xf32>
    tpu.vector_store %arg4[%c0_5, %c0_6], %5 {strides = array<i32>} : memref<16x512xf32, #tpu.memory_space<vmem>>, vector<16x512xf32>,
    return
  }
  func.func @transform_0(%arg0: i32) -> (i32, i32) {
    %c0_i32 = arith.constant 0 : i32
    %c0_i32_0 = arith.constant 0 : i32
    return %arg0, %c0_i32 : i32, i32
  }
  func.func @transform_1(%arg0: i32) -> (i32, i32) {
    %c0_i32 = arith.constant 0 : i32
    %c0_i32_0 = arith.constant 0 : i32
    %c0_i32_1 = arith.constant 0 : i32
    return %c0_i32, %c0_i32_0 : i32, i32
  }
  func.func @transform_2(%arg0: i32) -> (i32, i32) {
    %c0_i32 = arith.constant 0 : i32
    %c0_i32_0 = arith.constant 0 : i32
    %c0_i32_1 = arith.constant 0 : i32
    return %c0_i32, %c0_i32_0 : i32, i32
  }
  func.func @transform_3(%arg0: i32) -> (i32, i32) {
    %c0_i32 = arith.constant 0 : i32
    %c0_i32_0 = arith.constant 0 : i32
    return %arg0, %c0_i32 : i32, i32
  }
}

</mosaic_0001>

<llo_original>
// kernel: rnn_forward.2
$region0: #{rnn_forward.2}
  #allocation0 [shape = 'u32[]', space=smem, size = 0x4, offset = 0x4, fixed_abs, tag = 'smem constant byte address 0x4 - core index']
  #allocation1 [shape = 'u32[144,128]{1,0:T(1,128)}', space=vmem, size = 0x12000, scoped, tag = 'internal scratch']
  %s0 = inlined_call_operand.vmem [shape: f32[16,16], index: 0, kind: input, shape index: {}]
  %s1 = inlined_call_operand.vmem [shape: f32[16,512], index: 1, kind: input, shape index: {}]
  %s2 = inlined_call_operand.vmem [shape: f32[1,512], index: 2, kind: input, shape index: {}]
  %s3 = inlined_call_operand.vmem [shape: f32[16,512], index: 3, kind: output, shape index: {}]
  %s4 = sld [smem:[#allocation0]]
  $region22: #{rnn_forward.2} parent=0
    _
  %s6 = ssub.s32 1, %s4
  %s7 = scalar_select 0, %s6, %s4
  // Predicated region
  $region2: #{rnn_forward.2} parent=0 // pred_check
    _
  $region3: #{rnn_forward.2} parent=0 // pred_check_branch
    %9 = sbr.rel (0) target = $region5
  $region4: #{rnn_forward.2} parent=0 // pred_region
    _
  $region5: #{rnn_forward.2} parent=0 // pred_fallthru
    _
  // Predicated region
  $region6: #{rnn_forward.2} parent=0 // pred_check
    _
  $region7: #{rnn_forward.2} parent=0 // pred_check_branch
    %11 = sbr.rel (0) target = $region9
  $region8: #{rnn_forward.2} parent=0 // pred_region
    _
  $region9: #{rnn_forward.2} parent=0 // pred_fallthru
    _
  // Predicated region
  $region10: #{rnn_forward.2} parent=0 // pred_check
    _
  $region11: #{rnn_forward.2} parent=0 // pred_check_branch
    %13 = sbr.rel (0) target = $region13
  $region12: #{rnn_forward.2} parent=0 // pred_region
    _
  $region13: #{rnn_forward.2} parent=0 // pred_fallthru
    _
  %v14 = vld [vmem:[%s0] sm:$0xff]
  %v15 = vld [vmem:[%s0 + $0x8] sm:$0xff]
  %v16 = vld [vmem:[%s1] sm:$0xff]
  %v17 = vld [vmem:[%s1 + $0x8] sm:$0xff]
  %v18 = vld [vmem:[%s1 + $0x10] sm:$0xff]
  %v19 = vld [vmem:[%s1 + $0x18] sm:$0xff]
  %v20 = vld [vmem:[%s1 + $0x20] sm:$0xff]
  %v21 = vld [vmem:[%s1 + $0x28] sm:$0xff]
  %v22 = vld [vmem:[%s1 + $0x30] sm:$0xff]
  %v23 = vld [vmem:[%s1 + $0x38] sm:$0xff]
  %v24 = vld [vmem:[%s2] sm:$0xf]
  %v26 = vlaneseq
  %v27 = vshrl.u32 %v26, 7
  %v28 = vsub.s32 0, %v27
  %v29 = vrot.slane %v24, %v28
  %v30 = vlaneseq
  %v31 = vshrl.u32 %v30, 7
  %v32 = vsub.s32 1, %v31
  %v33 = vrot.slane %v24, %v32
  %v34 = vlaneseq
  %v35 = vshrl.u32 %v34, 7
  %v36 = vsub.s32 2, %v35
  %v37 = vrot.slane %v24, %v36
  %v38 = vlaneseq
  %v39 = vshrl.u32 %v38, 7
  %v40 = vsub.s32 3, %v39
  %v41 = vrot.slane %v24, %v40
  %vm46 = vcmask 130048
  %v48 = vsel %vm46, %v14, 0
  %v51 = vsel %vm46, %v15, 0
  %53 = vmatprep.subr.mxu0 %v17
  %54 = vmatpush1.msra.mxu0 %v16
  %55 = vmatprep.subr.mxu0 %v21
  %56 = vmatpush1.msra.mxu0 %v20
  %57 = vmatprep.subr.mxu0 0.0
  %58 = vmatpush1.msra.mxu0 0.0
  %59 = vmatprep.subr.mxu0 0.0
  %60 = vmatpush1.msra.mxu0 0.0
  %61 = vmatprep.subr.mxu0 0.0
  %62 = vmatpush1.msra.mxu0 0.0
  %63 = vmatprep.subr.mxu0 0.0
  %64 = vmatpush1.msra.mxu0 0.0
  %65 = vmatprep.subr.mxu0 0.0
  %66 = vmatpush1.msra.mxu0 0.0
  %67 = vmatprep.subr.mxu0 0.0
  %68 = vmatpush1.msra.mxu0 0.0
  %69 = vmatprep.subr.mxu0 0.0
  %70 = vmatpush1.msra.mxu0 0.0
  %71 = vmatprep.subr.mxu0 0.0
  %72 = vmatpush1.msra.mxu0 0.0
  %73 = vmatprep.subr.mxu0 0.0
  %74 = vmatpush1.msra.mxu0 0.0
  %75 = vmatprep.subr.mxu0 0.0
  %76 = vmatpush1.msra.mxu0 0.0
  %77 = vmatprep.subr.mxu0 0.0
  %78 = vmatpush1.msra.mxu0 0.0
  %79 = vmatprep.subr.mxu0 0.0
  %80 = vmatpush1.msra.mxu0 0.0
  %81 = vmatprep.subr.mxu0 0.0
  %82 = vmatpush1.msra.mxu0 0.0
  %83 = vmatprep.subr.mxu0 0.0
  %84 = vmatpush1.msra.mxu0 0.0
  %85 = vmatprep.subr.mxu0 0.0
  %86 = vmatpush1.msra.mxu0 0.0
  %87 = vmatprep.subr.mxu0 0.0
  %88 = vmatpush1.msra.mxu0 0.0
  %89 = vmatprep.subr.mxu0 0.0
  %90 = vmatpush1.msra.mxu0 0.0
  %91 = vmatprep.subr.mxu0 0.0
  %92 = vmatpush1.msra.mxu0 0.0
  %93 = vmatprep.subr.mxu0 0.0
  %94 = vmatpush1.msra.mxu0 0.0
  %95 = vmatprep.subr.mxu0 0.0
  %96 = vmatpush1.msra.mxu0 0.0
  %97 = vmatprep.subr.mxu0 0.0
  %98 = vmatpush1.msra.mxu0 0.0
  %99 = vmatprep.subr.mxu0 0.0
  %100 = vmatpush1.msra.mxu0 0.0
  %101 = vmatprep.subr.mxu0 0.0
  %102 = vmatpush1.msra.mxu0 0.0
  %103 = vmatprep.subr.mxu0 0.0
  %104 = vmatpush1.msra.mxu0 0.0
  %105 = vmatprep.subr.mxu0 0.0
  %106 = vmatpush1.msra.mxu0 0.0
  %107 = vmatprep.subr.mxu0 0.0
  %108 = vmatpush1.msra.mxu0 0.0
  %109 = vmatprep.subr.mxu0 0.0
  %110 = vmatpush1.msra.mxu0 0.0
  %111 = vmatprep.subr.mxu0 0.0
  %112 = vmatpush1.msra.mxu0 0.0
  %113 = vmatprep.subr.mxu0 0.0
  %114 = vmatpush1.msra.mxu0 0.0
  %115 = vmatprep.subr.mxu0 0.0
  %116 = vmatpush1.msra.mxu0 0.0
  %117 = vmatprep.mubr.f32.mxu0 0.0
  %118 = vmatmul.mubr.f32.gmra.mrb[0].mxu0 %v48
  %v119 = vpop.f32.mrb[0].mxu0
  %v120 = vadd.f32 %v29, %v119
  %v121 = vpop.f32.mrb[0].mxu0
  %v122 = vadd.f32 %v33, %v121
  %123 = vmatprep.mubr.f32.mxu0 0.0
  %124 = vmatmul.mubr.f32.gmra.mrb[0].mxu0 %v51
  %v125 = vpop.f32.mrb[0].mxu0
  %v126 = vadd.f32 %v29, %v125
  %v127 = vpop.f32.mrb[0].mxu0
  %v128 = vadd.f32 %v33, %v127
  %129 = vdwg.mxu0
  %130 = vmatprep.subr.mxu0 %v19
  %131 = vmatpush1.msra.mxu0 %v18
  %132 = vmatprep.subr.mxu0 %v23
  %133 = vmatpush1.msra.mxu0 %v22
  %134 = vmatprep.subr.mxu0 0.0
  %135 = vmatpush1.msra.mxu0 0.0
  %136 = vmatprep.subr.mxu0 0.0
  %137 = vmatpush1.msra.mxu0 0.0
  %138 = vmatprep.subr.mxu0 0.0
  %139 = vmatpush1.msra.mxu0 0.0
  %140 = vmatprep.subr.mxu0 0.0
  %141 = vmatpush1.msra.mxu0 0.0
  %142 = vmatprep.subr.mxu0 0.0
  %143 = vmatpush1.msra.mxu0 0.0
  %144 = vmatprep.subr.mxu0 0.0
  %145 = vmatpush1.msra.mxu0 0.0
  %146 = vmatprep.subr.mxu0 0.0
  %147 = vmatpush1.msra.mxu0 0.0
  %148 = vmatprep.subr.mxu0 0.0
  %149 = vmatpush1.msra.mxu0 0.0
  %150 = vmatprep.subr.mxu0 0.0
  %151 = vmatpush1.msra.mxu0 0.0
  %152 = vmatprep.subr.mxu0 0.0
  %153 = vmatpush1.msra.mxu0 0.0
  %154 = vmatprep.subr.mxu0 0.0
  %155 = vmatpush1.msra.mxu0 0.0
  %156 = vmatprep.subr.mxu0 0.0
  %157 = vmatpush1.msra.mxu0 0.0
  %158 = vmatprep.subr.mxu0 0.0
  %159 = vmatpush1.msra.mxu0 0.0
  %160 = vmatprep.subr.mxu0 0.0
  %161 = vmatpush1.msra.mxu0 0.0
  %162 = vmatprep.subr.mxu0 0.0
  %163 = vmatpush1.msra.mxu0 0.0
  %164 = vmatprep.subr.mxu0 0.0
  %165 = vmatpush1.msra.mxu0 0.0
  %166 = vmatprep.subr.mxu0 0.0
  %167 = vmatpush1.msra.mxu0 0.0
  %168 = vmatprep.subr.mxu0 0.0
  %169 = vmatpush1.msra.mxu0 0.0
  %170 = vmatprep.subr.mxu0 0.0
  %171 = vmatpush1.msra.mxu0 0.0
  %172 = vmatprep.subr.mxu0 0.0
  %173 = vmatpush1.msra.mxu0 0.0
  %174 = vmatprep.subr.mxu0 0.0
  %175 = vmatpush1.msra.mxu0 0.0
  %176 = vmatprep.subr.mxu0 0.0
  %177 = vmatpush1.msra.mxu0 0.0
  %178 = vmatprep.subr.mxu0 0.0
  %179 = vmatpush1.msra.mxu0 0.0
  %180 = vmatprep.subr.mxu0 0.0
  %181 = vmatpush1.msra.mxu0 0.0
  %182 = vmatprep.subr.mxu0 0.0
  %183 = vmatpush1.msra.mxu0 0.0
  %184 = vmatprep.subr.mxu0 0.0
  %185 = vmatpush1.msra.mxu0 0.0
  %186 = vmatprep.subr.mxu0 0.0
  %187 = vmatpush1.msra.mxu0 0.0
  %188 = vmatprep.subr.mxu0 0.0
  %189 = vmatpush1.msra.mxu0 0.0
  %190 = vmatprep.subr.mxu0 0.0
  %191 = vmatpush1.msra.mxu0 0.0
  %192 = vmatprep.subr.mxu0 0.0
  %193 = vmatpush1.msra.mxu0 0.0
  %194 = vmatprep.mubr.f32.mxu0 0.0
  %195 = vmatmul.mubr.f32.gmra.mrb[0].mxu0 %v48
  %v196 = vpop.f32.mrb[0].mxu0
  %v197 = vadd.f32 %v37, %v196
  %v198 = vpop.f32.mrb[0].mxu0
  %v199 = vadd.f32 %v41, %v198
  %200 = vmatprep.mubr.f32.mxu0 0.0
  %201 = vmatmul.mubr.f32.gmra.mrb[0].mxu0 %v51
  %v202 = vpop.f32.mrb[0].mxu0
  %v203 = vadd.f32 %v37, %v202
  %v204 = vpop.f32.mrb[0].mxu0
  %v205 = vadd.f32 %v41, %v204
  %206 = vdwg.mxu0
  %207 = vst [vmem:[%s3] sm:$0xff] %v120
  %208 = vst [vmem:[%s3 + $0x8] sm:$0xff] %v122
  %209 = vst [vmem:[%s3 + $0x10] sm:$0xff] %v197
  %210 = vst [vmem:[%s3 + $0x18] sm:$0xff] %v199
  %211 = vst [vmem:[%s3 + $0x20] sm:$0xff] %v126
  %212 = vst [vmem:[%s3 + $0x28] sm:$0xff] %v128
  %213 = vst [vmem:[%s3 + $0x30] sm:$0xff] %v203
  %214 = vst [vmem:[%s3 + $0x38] sm:$0xff] %v205
  // Predicated region
  $region14: #{rnn_forward.2} parent=0 // pred_check
    _
  $region15: #{rnn_forward.2} parent=0 // pred_check_branch
    %216 = sbr.rel (0) target = $region17
  $region16: #{rnn_forward.2} parent=0 // pred_region
    _
  $region17: #{rnn_forward.2} parent=0 // pred_fallthru
    _
  // Predicated region
  $region18: #{rnn_forward.2} parent=0 // pred_check
    _
  $region19: #{rnn_forward.2} parent=0 // pred_check_branch
    %218 = sbr.rel (0) target = $region21
  $region20: #{rnn_forward.2} parent=0 // pred_region
    _
  $region21: #{rnn_forward.2} parent=0 // pred_fallthru
    _

// kernel: rnn_forward.3
$region0: #{rnn_forward.3}
  #allocation0 [shape = 'u32[]', space=smem, size = 0x4, offset = 0x4, fixed_abs, tag = 'smem constant byte address 0x4 - core index']
  #allocation1 [shape = 'u32[144,128]{1,0:T(1,128)}', space=vmem, size = 0x12000, scoped, tag = 'internal scratch']
  #allocation2 [shape = 'f32[2,128]{1,0:T(2,128)}', space=vmem, size = 0x400, scoped, tag = 'scratch operand']
  #allocation3 [shape = 'f32[2,128]{1,0:T(2,128)}', space=vmem, size = 0x400, scoped, tag = 'scratch operand']
  %s0 = inlined_call_operand.vmem [shape: f32[8,2,512], index: 0, kind: input, shape index: {}]
  %s1 = inlined_call_operand.vmem [shape: f32[128,512], index: 1, kind: input, shape index: {}]
  %s2 = inlined_call_operand.vmem [shape: s32[2,1], index: 2, kind: input, shape index: {}]
  %s3 = inlined_call_operand.hbm [shape: f32[8,2,128], index: 3, kind: output, shape index: {}]
  %s4 = sld [smem:[#allocation0]]
  $region26: #{rnn_forward.3} parent=0
    _
  %s6 = ssub.s32 1, %s4
  %s7 = scalar_select 0, %s6, %s4
  $region1: #{rnn_forward.3} parent=0
    #allocation4 [shape = 'u8[8192]{0}', space=vmem, size = 0x2000, scoped, tag = 'output window, operand 0, single buffered']
    #allocation5 [shape = 's32[1]{0}', space=sflag, size = 0x4, scoped, tag = 'scoped memory for rnn_forward.3']
    %8 = vsyncpa [#allocation5], 0
    // Predicated region
    $region2: #{rnn_forward.3} parent=1 // pred_check
      _
    $region3: #{rnn_forward.3} parent=1 // pred_check_branch
      %10 = sbr.rel (0) target = $region5
    $region4: #{rnn_forward.3} parent=1 // pred_region
      _
    $region5: #{rnn_forward.3} parent=1 // pred_fallthru
      _
    // Predicated region
    $region6: #{rnn_forward.3} parent=1 // pred_check
      _
    $region7: #{rnn_forward.3} parent=1 // pred_check_branch
      %12 = sbr.rel (0) target = $region9
    $region8: #{rnn_forward.3} parent=1 // pred_region
      _
    $region9: #{rnn_forward.3} parent=1 // pred_fallthru
      _
    // Predicated region
    $region10: #{rnn_forward.3} parent=1 // pred_check
      _
    $region11: #{rnn_forward.3} parent=1 // pred_check_branch
      %14 = sbr.rel (0) target = $region13
    $region12: #{rnn_forward.3} parent=1 // pred_region
      _
    $region13: #{rnn_forward.3} parent=1 // pred_fallthru
      _
    %p15 = scmp.eq.s32.totalorder 0, 0
    // Predicated region
    $region14: #{rnn_forward.3} parent=1 // pred_check
      %p16 = pneg %p15
    $region15: #{rnn_forward.3} parent=1 // pred_check_branch
      %18 = sbr.rel (%p16) target = $region17
    $region16: #{rnn_forward.3} parent=1 // pred_region
      %19 = vst [vmem:[#allocation2] sm:$0x3] 0.0
      %20 = vst [vmem:[#allocation3] sm:$0x3] 0.0
    $region17: #{rnn_forward.3} parent=1 // pred_fallthru
      _
    %v21 = vld [vmem:[%s1] sm:$0xff]
    %v22 = vld [vmem:[%s1 + $0x8] sm:$0xff]
    %v23 = vld [vmem:[%s1 + $0x10] sm:$0xff]
    %v24 = vld [vmem:[%s1 + $0x18] sm:$0xff]
    %v25 = vld [vmem:[%s1 + $0x20] sm:$0xff]
    %v26 = vld [vmem:[%s1 + $0x28] sm:$0xff]
    %v27 = vld [vmem:[%s1 + $0x30] sm:$0xff]
    %v28 = vld [vmem:[%s1 + $0x38] sm:$0xff]
    %v29 = vld [vmem:[%s1 + $0x40] sm:$0xff]
    %v30 = vld [vmem:[%s1 + $0x48] sm:$0xff]
    %v31 = vld [vmem:[%s1 + $0x50] sm:$0xff]
    %v32 = vld [vmem:[%s1 + $0x58] sm:$0xff]
    %v33 = vld [vmem:[%s1 + $0x60] sm:$0xff]
    %v34 = vld [vmem:[%s1 + $0x68] sm:$0xff]
    %v35 = vld [vmem:[%s1 + $0x70] sm:$0xff]
    %v36 = vld [vmem:[%s1 + $0x78] sm:$0xff]
    %v37 = vld [vmem:[%s1 + $0x80] sm:$0xff]
    %v38 = vld [vmem:[%s1 + $0x88] sm:$0xff]
    %v39 = vld [vmem:[%s1 + $0x90] sm:$0xff]
    %v40 = vld [vmem:[%s1 + $0x98] sm:$0xff]
    %v41 = vld [vmem:[%s1 + $0xa0] sm:$0xff]
    %v42 = vld [vmem:[%s1 + $0xa8] sm:$0xff]
    %v43 = vld [vmem:[%s1 + $0xb0] sm:$0xff]
    %v44 = vld [vmem:[%s1 + $0xb8] sm:$0xff]
    %v45 = vld [vmem:[%s1 + $0xc0] sm:$0xff]
    %v46 = vld [vmem:[%s1 + $0xc8] sm:$0xff]
    %v47 = vld [vmem:[%s1 + $0xd0] sm:$0xff]
    %v48 = vld [vmem:[%s1 + $0xd8] sm:$0xff]
    %v49 = vld [vmem:[%s1 + $0xe0] sm:$0xff]
    %v50 = vld [vmem:[%s1 + $0xe8] sm:$0xff]
    %v51 = vld [vmem:[%s1 + $0xf0] sm:$0xff]
    %v52 = vld [vmem:[%s1 + $0xf8] sm:$0xff]
    %v53 = vld [vmem:[%s1 + $0x100] sm:$0xff]
    %v54 = vld [vmem:[%s1 + $0x108] sm:$0xff]
    %v55 = vld [vmem:[%s1 + $0x110] sm:$0xff]
    %v56 = vld [vmem:[%s1 + $0x118] sm:$0xff]
    %v57 = vld [vmem:[%s1 + $0x120] sm:$0xff]
    %v58 = vld [vmem:[%s1 + $0x128] sm:$0xff]
    %v59 = vld [vmem:[%s1 + $0x130] sm:$0xff]
    %v60 = vld [vmem:[%s1 + $0x138] sm:$0xff]
    %v61 = vld [vmem:[%s1 + $0x140] sm:$0xff]
    %v62 = vld [vmem:[%s1 + $0x148] sm:$0xff]
    %v63 = vld [vmem:[%s1 + $0x150] sm:$0xff]
    %v64 = vld [vmem:[%s1 + $0x158] sm:$0xff]
    %v65 = vld [vmem:[%s1 + $0x160] sm:$0xff]
    %v66 = vld [vmem:[%s1 + $0x168] sm:$0xff]
    %v67 = vld [vmem:[%s1 + $0x170] sm:$0xff]
    %v68 = vld [vmem:[%s1 + $0x178] sm:$0xff]
    %v69 = vld [vmem:[%s1 + $0x180] sm:$0xff]
    %v70 = vld [vmem:[%s1 + $0x188] sm:$0xff]
    %v71 = vld [vmem:[%s1 + $0x190] sm:$0xff]
    %v72 = vld [vmem:[%s1 + $0x198] sm:$0xff]
    %v73 = vld [vmem:[%s1 + $0x1a0] sm:$0xff]
    %v74 = vld [vmem:[%s1 + $0x1a8] sm:$0xff]
    %v75 = vld [vmem:[%s1 + $0x1b0] sm:$0xff]
    %v76 = vld [vmem:[%s1 + $0x1b8] sm:$0xff]
    %v77 = vld [vmem:[%s1 + $0x1c0] sm:$0xff]
    %v78 = vld [vmem:[%s1 + $0x1c8] sm:$0xff]
    %v79 = vld [vmem:[%s1 + $0x1d0] sm:$0xff]
    %v80 = vld [vmem:[%s1 + $0x1d8] sm:$0xff]
    %v81 = vld [vmem:[%s1 + $0x1e0] sm:$0xff]
    %v82 = vld [vmem:[%s1 + $0x1e8] sm:$0xff]
    %v83 = vld [vmem:[%s1 + $0x1f0] sm:$0xff]
    %v84 = vld [vmem:[%s1 + $0x1f8] sm:$0xff]
    %v85 = vld [vmem:[%s2] sm:$0x3]
    %s86 = smul.u32 0, 8
    %v87 = vld [vmem:[#allocation2] sm:$0x3]
    %v88 = vld [vmem:[#allocation3] sm:$0x3]
    %v89 = vld [vmem:[%s0] sm:$0xff]
    %90 = vmatprep.subr.mxu0 %v22
    %91 = vmatpush1.msra.mxu0 %v21
    %92 = vmatprep.subr.mxu0 %v26
    %93 = vmatpush1.msra.mxu0 %v25
    %94 = vmatprep.subr.mxu0 %v30
    %95 = vmatpush1.msra.mxu0 %v29
    %96 = vmatprep.subr.mxu0 %v34
    %97 = vmatpush1.msra.mxu0 %v33
    %98 = vmatprep.subr.mxu0 %v38
    %99 = vmatpush1.msra.mxu0 %v37
    %100 = vmatprep.subr.mxu0 %v42
    %101 = vmatpush1.msra.mxu0 %v41
    %102 = vmatprep.subr.mxu0 %v46
    %103 = vmatpush1.msra.mxu0 %v45
    %104 = vmatprep.subr.mxu0 %v50
    %105 = vmatpush1.msra.mxu0 %v49
    %106 = vmatprep.subr.mxu0 %v54
    %107 = vmatpush1.msra.mxu0 %v53
    %108 = vmatprep.subr.mxu0 %v58
    %109 = vmatpush1.msra.mxu0 %v57
    %110 = vmatprep.subr.mxu0 %v62
    %111 = vmatpush1.msra.mxu0 %v61
    %112 = vmatprep.subr.mxu0 %v66
    %113 = vmatpush1.msra.mxu0 %v65
    %114 = vmatprep.subr.mxu0 %v70
    %115 = vmatpush1.msra.mxu0 %v69
    %116 = vmatprep.subr.mxu0 %v74
    %117 = vmatpush1.msra.mxu0 %v73
    %118 = vmatprep.subr.mxu0 %v78
    %119 = vmatpush1.msra.mxu0 %v77
    %120 = vmatprep.subr.mxu0 %v82
    %121 = vmatpush1.msra.mxu0 %v81
    %122 = vmatprep.subr.mxu0 0.0
    %123 = vmatpush1.msra.mxu0 0.0
    %124 = vmatprep.subr.mxu0 0.0
    %125 = vmatpush1.msra.mxu0 0.0
    %126 = vmatprep.subr.mxu0 0.0
    %127 = vmatpush1.msra.mxu0 0.0
    %128 = vmatprep.subr.mxu0 0.0
    %129 = vmatpush1.msra.mxu0 0.0
    %130 = vmatprep.subr.mxu0 0.0
    %131 = vmatpush1.msra.mxu0 0.0
    %132 = vmatprep.subr.mxu0 0.0
    %133 = vmatpush1.msra.mxu0 0.0
    %134 = vmatprep.subr.mxu0 0.0
    %135 = vmatpush1.msra.mxu0 0.0
    %136 = vmatprep.subr.mxu0 0.0
    %137 = vmatpush1.msra.mxu0 0.0
    %138 = vmatprep.subr.mxu0 0.0
    %139 = vmatpush1.msra.mxu0 0.0
    %140 = vmatprep.subr.mxu0 0.0
    %141 = vmatpush1.msra.mxu0 0.0
    %142 = vmatprep.subr.mxu0 0.0
    %143 = vmatpush1.msra.mxu0 0.0
    %144 = vmatprep.subr.mxu0 0.0
    %145 = vmatpush1.msra.mxu0 0.0
    %146 = vmatprep.subr.mxu0 0.0
    %147 = vmatpush1.msra.mxu0 0.0
    %148 = vmatprep.subr.mxu0 0.0
    %149 = vmatpush1.msra.mxu0 0.0
    %150 = vmatprep.subr.mxu0 0.0
    %151 = vmatpush1.msra.mxu0 0.0
    %152 = vmatprep.subr.mxu0 0.0
    %153 = vmatpush1.msra.mxu0 0.0
    %154 = vmatprep.mubr.f32.mxu0 0.0
    %155 = vmatmul.mubr.f32.gmra.mrb[0].mxu0 %v87
    %v156 = vpop.f32.mrb[0].mxu0
    %v157 = vadd.f32 0.0, %v156
    %v158 = vpop.f32.mrb[0].mxu0
    %v159 = vadd.f32 0.0, %v158
    %160 = vdwg.mxu0
    %161 = vmatprep.subr.mxu0 %v24
    %162 = vmatpush1.msra.mxu0 %v23
    %163 = vmatprep.subr.mxu0 %v28
    %164 = vmatpush1.msra.mxu0 %v27
    %165 = vmatprep.subr.mxu0 %v32
    %166 = vmatpush1.msra.mxu0 %v31
    %167 = vmatprep.subr.mxu0 %v36
    %168 = vmatpush1.msra.mxu0 %v35
    %169 = vmatprep.subr.mxu0 %v40
    %170 = vmatpush1.msra.mxu0 %v39
    %171 = vmatprep.subr.mxu0 %v44
    %172 = vmatpush1.msra.mxu0 %v43
    %173 = vmatprep.subr.mxu0 %v48
    %174 = vmatpush1.msra.mxu0 %v47
    %175 = vmatprep.subr.mxu0 %v52
    %176 = vmatpush1.msra.mxu0 %v51
    %177 = vmatprep.subr.mxu0 %v56
    %178 = vmatpush1.msra.mxu0 %v55
    %179 = vmatprep.subr.mxu0 %v60
    %180 = vmatpush1.msra.mxu0 %v59
    %181 = vmatprep.subr.mxu0 %v64
    %182 = vmatpush1.msra.mxu0 %v63
    %183 = vmatprep.subr.mxu0 %v68
    %184 = vmatpush1.msra.mxu0 %v67
    %185 = vmatprep.subr.mxu0 %v72
    %186 = vmatpush1.msra.mxu0 %v71
    %187 = vmatprep.subr.mxu0 %v76
    %188 = vmatpush1.msra.mxu0 %v75
    %189 = vmatprep.subr.mxu0 %v80
    %190 = vmatpush1.msra.mxu0 %v79
    %191 = vmatprep.subr.mxu0 %v84
    %192 = vmatpush1.msra.mxu0 %v83
    %193 = vmatprep.subr.mxu0 0.0
    %194 = vmatpush1.msra.mxu0 0.0
    %195 = vmatprep.subr.mxu0 0.0
    %196 = vmatpush1.msra.mxu0 0.0
    %197 = vmatprep.subr.mxu0 0.0
    %198 = vmatpush1.msra.mxu0 0.0
    %199 = vmatprep.subr.mxu0 0.0
    %200 = vmatpush1.msra.mxu0 0.0
    %201 = vmatprep.subr.mxu0 0.0
    %202 = vmatpush1.msra.mxu0 0.0
    %203 = vmatprep.subr.mxu0 0.0
    %204 = vmatpush1.msra.mxu0 0.0
    %205 = vmatprep.subr.mxu0 0.0
    %206 = vmatpush1.msra.mxu0 0.0
    %207 = vmatprep.subr.mxu0 0.0
    %208 = vmatpush1.msra.mxu0 0.0
    %209 = vmatprep.subr.mxu0 0.0
    %210 = vmatpush1.msra.mxu0 0.0
    %211 = vmatprep.subr.mxu0 0.0
    %212 = vmatpush1.msra.mxu0 0.0
    %213 = vmatprep.subr.mxu0 0.0
    %214 = vmatpush1.msra.mxu0 0.0
    %215 = vmatprep.subr.mxu0 0.0
    %216 = vmatpush1.msra.mxu0 0.0
    %217 = vmatprep.subr.mxu0 0.0
    %218 = vmatpush1.msra.mxu0 0.0
    %219 = vmatprep.subr.mxu0 0.0
    %220 = vmatpush1.msra.mxu0 0.0
    %221 = vmatprep.subr.mxu0 0.0
    %222 = vmatpush1.msra.mxu0 0.0
    %223 = vmatprep.subr.mxu0 0.0
    %224 = vmatpush1.msra.mxu0 0.0
    %225 = vmatprep.mubr.f32.mxu0 0.0
    %226 = vmatmul.mubr.f32.gmra.mrb[0].mxu0 %v87
    %v227 = vpop.f32.mrb[0].mxu0
    %v228 = vadd.f32 0.0, %v227
    %v229 = vpop.f32.mrb[0].mxu0
    %v230 = vadd.f32 0.0, %v229
    %231 = vdwg.mxu0
    %v236 = vcombine.low %v157, %v159
    %v237 = vcombine.low %v228, %v230
    %v239 = vunpack.c.l.s4 1983009808
    %v240 = vunpack.c.0.s8 %v239
    %v241 = vlaneseq
    %v242 = vshrl.u32 %v241, 7
    %v243 = vsub.s32 %v240, %v242
    %v244 = vrot.slane %v236, %v243
    %v246 = vunpack.c.l.s4 1983009808
    %v247 = vunpack.c.0.s8 %v246
    %v248 = vlaneseq
    %v249 = vshrl.u32 %v248, 7
    %v250 = vsub.s32 %v247, %v249
    %v251 = vrot.slane %v237, %v250
    %v252 = vcombine.low %v244, %v251
    %v254 = vadd.f32 %v89, %v252
    %v255 = vxor.u32 %v254, 2147483648
    %v256 = vmul.f32 %v255, 1.442695
    %v257 = vpow.pop %v256
    %v258 = vadd.f32 %v257, 1.0
    %v259 = vrcp.pop %v258
    %v260 = vmul.f32 1.0, %v259
    %v262 = vrot.slane %v254, 2
    %v264 = vxor.u32 %v262, 2147483648
    %v265 = vmul.f32 %v264, 1.442695
    %v266 = vpow.pop %v265
    %v267 = vadd.f32 %v266, 1.0
    %v268 = vrcp.pop %v267
    %v269 = vmul.f32 1.0, %v268
    %v270 = vrot.slane %v254, 4
    %v272 = vtanh.pop %v270
    %v273 = vrot.slane %v254, 6
    %v275 = vxor.u32 %v273, 2147483648
    %v276 = vmul.f32 %v275, 1.442695
    %v277 = vpow.pop %v276
    %v278 = vadd.f32 %v277, 1.0
    %v279 = vrcp.pop %v278
    %v280 = vmul.f32 1.0, %v279
    %v281 = vmul.f32 %v269, %v88
    %v282 = vmul.f32 %v260, %v272
    %v283 = vadd.f32 %v281, %v282
    %v284 = vtanh.pop %v283
    %v285 = vmul.f32 %v280, %v284
    %v286 = vstv %s86
    %vm287 = vcmp.lt.s32.totalorder %v286, %v85
    %v288 = vsel %vm287, 1, 0
    %289 = vset.pattern.permute.xlu0 0
    %290 = vperm.xlu0 %289, %v288
    %v291 = vpop.permute.xlu0 %290
    %vm292 = vcmp.eq.s32.totalorder %v291, 1
    %v293 = vsel %vm292, %v285, 0.0
    %294 = vst [vmem:[#allocation4] sm:$0x3] %v293
    %s295 = scalar_lea.vmem %s0, 8
    %v296 = vld [vmem:[%s295] sm:$0xff]
    %297 = vmatprep.subr.mxu0 %v22
    %298 = vmatpush1.msra.mxu0 %v21
    %299 = vmatprep.subr.mxu0 %v26
    %300 = vmatpush1.msra.mxu0 %v25
    %301 = vmatprep.subr.mxu0 %v30
    %302 = vmatpush1.msra.mxu0 %v29
    %303 = vmatprep.subr.mxu0 %v34
    %304 = vmatpush1.msra.mxu0 %v33
    %305 = vmatprep.subr.mxu0 %v38
    %306 = vmatpush1.msra.mxu0 %v37
    %307 = vmatprep.subr.mxu0 %v42
    %308 = vmatpush1.msra.mxu0 %v41
    %309 = vmatprep.subr.mxu0 %v46
    %310 = vmatpush1.msra.mxu0 %v45
    %311 = vmatprep.subr.mxu0 %v50
    %312 = vmatpush1.msra.mxu0 %v49
    %313 = vmatprep.subr.mxu0 %v54
    %314 = vmatpush1.msra.mxu0 %v53
    %315 = vmatprep.subr.mxu0 %v58
    %316 = vmatpush1.msra.mxu0 %v57
    %317 = vmatprep.subr.mxu0 %v62
    %318 = vmatpush1.msra.mxu0 %v61
    %319 = vmatprep.subr.mxu0 %v66
    %320 = vmatpush1.msra.mxu0 %v65
    %321 = vmatprep.subr.mxu0 %v70
    %322 = vmatpush1.msra.mxu0 %v69
    %323 = vmatprep.subr.mxu0 %v74
    %324 = vmatpush1.msra.mxu0 %v73
    %325 = vmatprep.subr.mxu0 %v78
    %326 = vmatpush1.msra.mxu0 %v77
    %327 = vmatprep.subr.mxu0 %v82
    %328 = vmatpush1.msra.mxu0 %v81
    %329 = vmatprep.subr.mxu0 0.0
    %330 = vmatpush1.msra.mxu0 0.0
    %331 = vmatprep.subr.mxu0 0.0
    %332 = vmatpush1.msra.mxu0 0.0
    %333 = vmatprep.subr.mxu0 0.0
    %334 = vmatpush1.msra.mxu0 0.0
    %335 = vmatprep.subr.mxu0 0.0
    %336 = vmatpush1.msra.mxu0 0.0
    %337 = vmatprep.subr.mxu0 0.0
    %338 = vmatpush1.msra.mxu0 0.0
    %339 = vmatprep.subr.mxu0 0.0
    %340 = vmatpush1.msra.mxu0 0.0
    %341 = vmatprep.subr.mxu0 0.0
    %342 = vmatpush1.msra.mxu0 0.0
    %343 = vmatprep.subr.mxu0 0.0
    %344 = vmatpush1.msra.mxu0 0.0
    %345 = vmatprep.subr.mxu0 0.0
    %346 = vmatpush1.msra.mxu0 0.0
    %347 = vmatprep.subr.mxu0 0.0
    %348 = vmatpush1.msra.mxu0 0.0
    %349 = vmatprep.subr.mxu0 0.0
    %350 = vmatpush1.msra.mxu0 0.0
    %351 = vmatprep.subr.mxu0 0.0
    %352 = vmatpush1.msra.mxu0 0.0
    %353 = vmatprep.subr.mxu0 0.0
    %354 = vmatpush1.msra.mxu0 0.0
    %355 = vmatprep.subr.mxu0 0.0
    %356 = vmatpush1.msra.mxu0 0.0
    %357 = vmatprep.subr.mxu0 0.0
    %358 = vmatpush1.msra.mxu0 0.0
    %359 = vmatprep.subr.mxu0 0.0
    %360 = vmatpush1.msra.mxu0 0.0
    %361 = vmatprep.mubr.f32.mxu0 0.0
    %362 = vmatmul.mubr.f32.gmra.mrb[0].mxu0 %v285
    %v363 = vpop.f32.mrb[0].mxu0
    %v364 = vadd.f32 0.0, %v363
    %v365 = vpop.f32.mrb[0].mxu0
    %v366 = vadd.f32 0.0, %v365
    %367 = vdwg.mxu0
    %368 = vmatprep.subr.mxu0 %v24
    %369 = vmatpush1.msra.mxu0 %v23
    %370 = vmatprep.subr.mxu0 %v28
    %371 = vmatpush1.msra.mxu0 %v27
    %372 = vmatprep.subr.mxu0 %v32
    %373 = vmatpush1.msra.mxu0 %v31
    %374 = vmatprep.subr.mxu0 %v36
    %375 = vmatpush1.msra.mxu0 %v35
    %376 = vmatprep.subr.mxu0 %v40
    %377 = vmatpush1.msra.mxu0 %v39
    %378 = vmatprep.subr.mxu0 %v44
    %379 = vmatpush1.msra.mxu0 %v43
    %380 = vmatprep.subr.mxu0 %v48
    %381 = vmatpush1.msra.mxu0 %v47
    %382 = vmatprep.subr.mxu0 %v52
    %383 = vmatpush1.msra.mxu0 %v51
    %384 = vmatprep.subr.mxu0 %v56
    %385 = vmatpush1.msra.mxu0 %v55
    %386 = vmatprep.subr.mxu0 %v60
    %387 = vmatpush1.msra.mxu0 %v59
    %388 = vmatprep.subr.mxu0 %v64
    %389 = vmatpush1.msra.mxu0 %v63
    %390 = vmatprep.subr.mxu0 %v68
    %391 = vmatpush1.msra.mxu0 %v67
    %392 = vmatprep.subr.mxu0 %v72
    %393 = vmatpush1.msra.mxu0 %v71
    %394 = vmatprep.subr.mxu0 %v76
    %395 = vmatpush1.msra.mxu0 %v75
    %396 = vmatprep.subr.mxu0 %v80
    %397 = vmatpush1.msra.mxu0 %v79
    %398 = vmatprep.subr.mxu0 %v84
    %399 = vmatpush1.msra.mxu0 %v83
    %400 = vmatprep.subr.mxu0 0.0
    %401 = vmatpush1.msra.mxu0 0.0
    %402 = vmatprep.subr.mxu0 0.0
    %403 = vmatpush1.msra.mxu0 0.0
    %404 = vmatprep.subr.mxu0 0.0
    %405 = vmatpush1.msra.mxu0 0.0
    %406 = vmatprep.subr.mxu0 0.0
    %407 = vmatpush1.msra.mxu0 0.0
    %408 = vmatprep.subr.mxu0 0.0
    %409 = vmatpush1.msra.mxu0 0.0
    %410 = vmatprep.subr.mxu0 0.0
    %411 = vmatpush1.msra.mxu0 0.0
    %412 = vmatprep.subr.mxu0 0.0
    %413 = vmatpush1.msra.mxu0 0.0
    %414 = vmatprep.subr.mxu0 0.0
    %415 = vmatpush1.msra.mxu0 0.0
    %416 = vmatprep.subr.mxu0 0.0
    %417 = vmatpush1.msra.mxu0 0.0
    %418 = vmatprep.subr.mxu0 0.0
    %419 = vmatpush1.msra.mxu0 0.0
    %420 = vmatprep.subr.mxu0 0.0
    %421 = vmatpush1.msra.mxu0 0.0
    %422 = vmatprep.subr.mxu0 0.0
    %423 = vmatpush1.msra.mxu0 0.0
    %424 = vmatprep.subr.mxu0 0.0
    %425 = vmatpush1.msra.mxu0 0.0
    %426 = vmatprep.subr.mxu0 0.0
    %427 = vmatpush1.msra.mxu0 0.0
    %428 = vmatprep.subr.mxu0 0.0
    %429 = vmatpush1.msra.mxu0 0.0
    %430 = vmatprep.subr.mxu0 0.0
    %431 = vmatpush1.msra.mxu0 0.0
    %432 = vmatprep.mubr.f32.mxu0 0.0
    %433 = vmatmul.mubr.f32.gmra.mrb[0].mxu0 %v285
    %v434 = vpop.f32.mrb[0].mxu0
    %v435 = vadd.f32 0.0, %v434
    %v436 = vpop.f32.mrb[0].mxu0
    %v437 = vadd.f32 0.0, %v436
    %438 = vdwg.mxu0
    %v443 = vcombine.low %v364, %v366
    %v444 = vcombine.low %v435, %v437
    %v446 = vunpack.c.l.s4 1983009808
    %v447 = vunpack.c.0.s8 %v446
    %v448 = vlaneseq
    %v449 = vshrl.u32 %v448, 7
    %v450 = vsub.s32 %v447, %v449
    %v451 = vrot.slane %v443, %v450
    %v453 = vunpack.c.l.s4 1983009808
    %v454 = vunpack.c.0.s8 %v453
    %v455 = vlaneseq
    %v456 = vshrl.u32 %v455, 7
    %v457 = vsub.s32 %v454, %v456
    %v458 = vrot.slane %v444, %v457
    %v459 = vcombine.low %v451, %v458
    %v461 = vadd.f32 %v296, %v459
    %v462 = vxor.u32 %v461, 2147483648
    %v463 = vmul.f32 %v462, 1.442695
    %v464 = vpow.pop %v463
    %v465 = vadd.f32 %v464, 1.0
    %v466 = vrcp.pop %v465
    %v467 = vmul.f32 1.0, %v466
    %v469 = vrot.slane %v461, 2
    %v471 = vxor.u32 %v469, 2147483648
    %v472 = vmul.f32 %v471, 1.442695
    %v473 = vpow.pop %v472
    %v474 = vadd.f32 %v473, 1.0
    %v475 = vrcp.pop %v474
    %v476 = vmul.f32 1.0, %v475
    %v477 = vrot.slane %v461, 4
    %v479 = vtanh.pop %v477
    %v480 = vrot.slane %v461, 6
    %v482 = vxor.u32 %v480, 2147483648
    %v483 = vmul.f32 %v482, 1.442695
    %v484 = vpow.pop %v483
    %v485 = vadd.f32 %v484, 1.0
    %v486 = vrcp.pop %v485
    %v487 = vmul.f32 1.0, %v486
    %v488 = vmul.f32 %v476, %v283
    %v489 = vmul.f32 %v467, %v479
    %v490 = vadd.f32 %v488, %v489
    %v491 = vtanh.pop %v490
    %v492 = vmul.f32 %v487, %v491
    %s493 = sadd.s32 %s86, 1
    %v494 = vstv %s493
    %vm495 = vcmp.lt.s32.totalorder %v494, %v85
    %v496 = vsel %vm495, 1, 0
    %497 = vset.pattern.permute.xlu0 0
    %498 = vperm.xlu0 %497, %v496
    %v499 = vpop.permute.xlu0 %498
    %vm500 = vcmp.eq.s32.totalorder %v499, 1
    %v501 = vsel %vm500, %v492, 0.0
    %s502 = scalar_lea.vmem [#allocation4], 2
    %503 = vst [vmem:[%s502] sm:$0x3] %v501
    %s504 = scalar_lea.vmem %s0, 16
    %v505 = vld [vmem:[%s504] sm:$0xff]
    %506 = vmatprep.subr.mxu0 %v22
    %507 = vmatpush1.msra.mxu0 %v21
    %508 = vmatprep.subr.mxu0 %v26
    %509 = vmatpush1.msra.mxu0 %v25
    %510 = vmatprep.subr.mxu0 %v30
    %511 = vmatpush1.msra.mxu0 %v29
    %512 = vmatprep.subr.mxu0 %v34
    %513 = vmatpush1.msra.mxu0 %v33
    %514 = vmatprep.subr.mxu0 %v38
    %515 = vmatpush1.msra.mxu0 %v37
    %516 = vmatprep.subr.mxu0 %v42
    %517 = vmatpush1.msra.mxu0 %v41
    %518 = vmatprep.subr.mxu0 %v46
    %519 = vmatpush1.msra.mxu0 %v45
    %520 = vmatprep.subr.mxu0 %v50
    %521 = vmatpush1.msra.mxu0 %v49
    %522 = vmatprep.subr.mxu0 %v54
    %523 = vmatpush1.msra.mxu0 %v53
    %524 = vmatprep.subr.mxu0 %v58
    %525 = vmatpush1.msra.mxu0 %v57
    %526 = vmatprep.subr.mxu0 %v62
    %527 = vmatpush1.msra.mxu0 %v61
    %528 = vmatprep.subr.mxu0 %v66
    %529 = vmatpush1.msra.mxu0 %v65
    %530 = vmatprep.subr.mxu0 %v70
    %531 = vmatpush1.msra.mxu0 %v69
    %532 = vmatprep.subr.mxu0 %v74
    %533 = vmatpush1.msra.mxu0 %v73
    %534 = vmatprep.subr.mxu0 %v78
    %535 = vmatpush1.msra.mxu0 %v77
    %536 = vmatprep.subr.mxu0 %v82
    %537 = vmatpush1.msra.mxu0 %v81
    %538 = vmatprep.subr.mxu0 0.0
    %539 = vmatpush1.msra.mxu0 0.0
    %540 = vmatprep.subr.mxu0 0.0
    %541 = vmatpush1.msra.mxu0 0.0
    %542 = vmatprep.subr.mxu0 0.0
    %543 = vmatpush1.msra.mxu0 0.0
    %544 = vmatprep.subr.mxu0 0.0
    %545 = vmatpush1.msra.mxu0 0.0
    %546 = vmatprep.subr.mxu0 0.0
    %547 = vmatpush1.msra.mxu0 0.0
    %548 = vmatprep.subr.mxu0 0.0
    %549 = vmatpush1.msra.mxu0 0.0
    %550 = vmatprep.subr.mxu0 0.0
    %551 = vmatpush1.msra.mxu0 0.0
    %552 = vmatprep.subr.mxu0 0.0
    %553 = vmatpush1.msra.mxu0 0.0
    %554 = vmatprep.subr.mxu0 0.0
    %555 = vmatpush1.msra.mxu0 0.0
    %556 = vmatprep.subr.mxu0 0.0
    %557 = vmatpush1.msra.mxu0 0.0
    %558 = vmatprep.subr.mxu0 0.0
    %559 = vmatpush1.msra.mxu0 0.0
    %560 = vmatprep.subr.mxu0 0.0
    %561 = vmatpush1.msra.mxu0 0.0
    %562 = vmatprep.subr.mxu0 0.0
    %563 = vmatpush1.msra.mxu0 0.0
    %564 = vmatprep.subr.mxu0 0.0
    %565 = vmatpush1.msra.mxu0 0.0
    %566 = vmatprep.subr.mxu0 0.0
    %567 = vmatpush1.msra.mxu0 0.0
    %568 = vmatprep.subr.mxu0 0.0
    %569 = vmatpush1.msra.mxu0 0.0
    %570 = vmatprep.mubr.f32.mxu0 0.0
    %571 = vmatmul.mubr.f32.gmra.mrb[0].mxu0 %v492
    %v572 = vpop.f32.mrb[0].mxu0
    %v573 = vadd.f32 0.0, %v572
    %v574 = vpop.f32.mrb[0].mxu0
    %v575 = vadd.f32 0.0, %v574
    %576 = vdwg.mxu0
    %577 = vmatprep.subr.mxu0 %v24
    %578 = vmatpush1.msra.mxu0 %v23
    %579 = vmatprep.subr.mxu0 %v28
    %580 = vmatpush1.msra.mxu0 %v27
    %581 = vmatprep.subr.mxu0 %v32
    %582 = vmatpush1.msra.mxu0 %v31
    %583 = vmatprep.subr.mxu0 %v36
    %584 = vmatpush1.msra.mxu0 %v35
    %585 = vmatprep.subr.mxu0 %v40
    %586 = vmatpush1.msra.mxu0 %v39
    %587 = vmatprep.subr.mxu0 %v44
    %588 = vmatpush1.msra.mxu0 %v43
    %589 = vmatprep.subr.mxu0 %v48
    %590 = vmatpush1.msra.mxu0 %v47
    %591 = vmatprep.subr.mxu0 %v52
    %592 = vmatpush1.msra.mxu0 %v51
    %593 = vmatprep.subr.mxu0 %v56
    %594 = vmatpush1.msra.mxu0 %v55
    %595 = vmatprep.subr.mxu0 %v60
    %596 = vmatpush1.msra.mxu0 %v59
    %597 = vmatprep.subr.mxu0 %v64
    %598 = vmatpush1.msra.mxu0 %v63
    %599 = vmatprep.subr.mxu0 %v68
    %600 = vmatpush1.msra.mxu0 %v67
    %601 = vmatprep.subr.mxu0 %v72
    %602 = vmatpush1.msra.mxu0 %v71
    %603 = vmatprep.subr.mxu0 %v76
    %604 = vmatpush1.msra.mxu0 %v75
    %605 = vmatprep.subr.mxu0 %v80
    %606 = vmatpush1.msra.mxu0 %v79
    %607 = vmatprep.subr.mxu0 %v84
    %608 = vmatpush1.msra.mxu0 %v83
    %609 = vmatprep.subr.mxu0 0.0
    %610 = vmatpush1.msra.mxu0 0.0
    %611 = vmatprep.subr.mxu0 0.0
    %612 = vmatpush1.msra.mxu0 0.0
    %613 = vmatprep.subr.mxu0 0.0
    %614 = vmatpush1.msra.mxu0 0.0
    %615 = vmatprep.subr.mxu0 0.0
    %616 = vmatpush1.msra.mxu0 0.0
    %617 = vmatprep.subr.mxu0 0.0
    %618 = vmatpush1.msra.mxu0 0.0
    %619 = vmatprep.subr.mxu0 0.0
    %620 = vmatpush1.msra.mxu0 0.0
    %621 = vmatprep.subr.mxu0 0.0
    %622 = vmatpush1.msra.mxu0 0.0
    %623 = vmatprep.subr.mxu0 0.0
    %624 = vmatpush1.msra.mxu0 0.0
    %625 = vmatprep.subr.mxu0 0.0
    %626 = vmatpush1.msra.mxu0 0.0
    %627 = vmatprep.subr.mxu0 0.0
    %628 = vmatpush1.msra.mxu0 0.0
    %629 = vmatprep.subr.mxu0 0.0
    %630 = vmatpush1.msra.mxu0 0.0
    %631 = vmatprep.subr.mxu0 0.0
    %632 = vmatpush1.msra.mxu0 0.0
    %633 = vmatprep.subr.mxu0 0.0
    %634 = vmatpush1.msra.mxu0 0.0
    %635 = vmatprep.subr.mxu0 0.0
    %636 = vmatpush1.msra.mxu0 0.0
    %637 = vmatprep.subr.mxu0 0.0
    %638 = vmatpush1.msra.mxu0 0.0
    %639 = vmatprep.subr.mxu0 0.0
    %640 = vmatpush1.msra.mxu0 0.0
    %641 = vmatprep.mubr.f32.mxu0 0.0
    %642 = vmatmul.mubr.f32.gmra.mrb[0].mxu0 %v492
    %v643 = vpop.f32.mrb[0].mxu0
    %v644 = vadd.f32 0.0, %v643
    %v645 = vpop.f32.mrb[0].mxu0
    %v646 = vadd.f32 0.0, %v645
    %647 = vdwg.mxu0
    %v652 = vcombine.low %v573, %v575
    %v653 = vcombine.low %v644, %v646
    %v655 = vunpack.c.l.s4 1983009808
    %v656 = vunpack.c.0.s8 %v655
    %v657 = vlaneseq
    %v658 = vshrl.u32 %v657, 7
    %v659 = vsub.s32 %v656, %v658
    %v660 = vrot.slane %v652, %v659
    %v662 = vunpack.c.l.s4 1983009808
    %v663 = vunpack.c.0.s8 %v662
    %v664 = vlaneseq
    %v665 = vshrl.u32 %v664, 7
    %v666 = vsub.s32 %v663, %v665
    %v667 = vrot.slane %v653, %v666
    %v668 = vcombine.low %v660, %v667
    %v670 = vadd.f32 %v505, %v668
    %v671 = vxor.u32 %v670, 2147483648
    %v672 = vmul.f32 %v671, 1.442695
    %v673 = vpow.pop %v672
    %v674 = vadd.f32 %v673, 1.0
    %v675 = vrcp.pop %v674
    %v676 = vmul.f32 1.0, %v675
    %v678 = vrot.slane %v670, 2
    %v680 = vxor.u32 %v678, 2147483648
    %v681 = vmul.f32 %v680, 1.442695
    %v682 = vpow.pop %v681
    %v683 = vadd.f32 %v682, 1.0
    %v684 = vrcp.pop %v683
    %v685 = vmul.f32 1.0, %v684
    %v686 = vrot.slane %v670, 4
    %v688 = vtanh.pop %v686
    %v689 = vrot.slane %v670, 6
    %v691 = vxor.u32 %v689, 2147483648
    %v692 = vmul.f32 %v691, 1.442695
    %v693 = vpow.pop %v692
    %v694 = vadd.f32 %v693, 1.0
    %v695 = vrcp.pop %v694
    %v696 = vmul.f32 1.0, %v695
    %v697 = vmul.f32 %v685, %v490
    %v698 = vmul.f32 %v676, %v688
    %v699 = vadd.f32 %v697, %v698
    %v700 = vtanh.pop %v699
    %v701 = vmul.f32 %v696, %v700
    %s702 = sadd.s32 %s86, 2
    %v703 = vstv %s702
    %vm704 = vcmp.lt.s32.totalorder %v703, %v85
    %v705 = vsel %vm704, 1, 0
    %706 = vset.pattern.permute.xlu0 0
    %707 = vperm.xlu0 %706, %v705
    %v708 = vpop.permute.xlu0 %707
    %vm709 = vcmp.eq.s32.totalorder %v708, 1
    %v710 = vsel %vm709, %v701, 0.0
    %s711 = scalar_lea.vmem [#allocation4], 4
    %712 = vst [vmem:[%s711] sm:$0x3] %v710
    %s713 = scalar_lea.vmem %s0, 24
    %v714 = vld [vmem:[%s713] sm:$0xff]
    %715 = vmatprep.subr.mxu0 %v22
    %716 = vmatpush1.msra.mxu0 %v21
    %717 = vmatprep.subr.mxu0 %v26
    %718 = vmatpush1.msra.mxu0 %v25
    %719 = vmatprep.subr.mxu0 %v30
    %720 = vmatpush1.msra.mxu0 %v29
    %721 = vmatprep.subr.mxu0 %v34
    %722 = vmatpush1.msra.mxu0 %v33
    %723 = vmatprep.subr.mxu0 %v38
    %724 = vmatpush1.msra.mxu0 %v37
    %725 = vmatprep.subr.mxu0 %v42
    %726 = vmatpush1.msra.mxu0 %v41
    %727 = vmatprep.subr.mxu0 %v46
    %728 = vmatpush1.msra.mxu0 %v45
    %729 = vmatprep.subr.mxu0 %v50
    %730 = vmatpush1.msra.mxu0 %v49
    %731 = vmatprep.subr.mxu0 %v54
    %732 = vmatpush1.msra.mxu0 %v53
    %733 = vmatprep.subr.mxu0 %v58
    %734 = vmatpush1.msra.mxu0 %v57
    %735 = vmatprep.subr.mxu0 %v62
    %736 = vmatpush1.msra.mxu0 %v61
    %737 = vmatprep.subr.mxu0 %v66
    %738 = vmatpush1.msra.mxu0 %v65
    %739 = vmatprep.subr.mxu0 %v70
    %740 = vmatpush1.msra.mxu0 %v69
    %741 = vmatprep.subr.mxu0 %v74
    %742 = vmatpush1.msra.mxu0 %v73
    %743 = vmatprep.subr.mxu0 %v78
    %744 = vmatpush1.msra.mxu0 %v77
    %745 = vmatprep.subr.mxu0 %v82
    %746 = vmatpush1.msra.mxu0 %v81
    %747 = vmatprep.subr.mxu0 0.0
    %748 = vmatpush1.msra.mxu0 0.0
    %749 = vmatprep.subr.mxu0 0.0
    %750 = vmatpush1.msra.mxu0 0.0
    %751 = vmatprep.subr.mxu0 0.0
    %752 = vmatpush1.msra.mxu0 0.0
    %753 = vmatprep.subr.mxu0 0.0
    %754 = vmatpush1.msra.mxu0 0.0
    %755 = vmatprep.subr.mxu0 0.0
    %756 = vmatpush1.msra.mxu0 0.0
    %757 = vmatprep.subr.mxu0 0.0
    %758 = vmatpush1.msra.mxu0 0.0
    %759 = vmatprep.subr.mxu0 0.0
    %760 = vmatpush1.msra.mxu0 0.0
    %761 = vmatprep.subr.mxu0 0.0
    %762 = vmatpush1.msra.mxu0 0.0
    %763 = vmatprep.subr.mxu0 0.0
    %764 = vmatpush1.msra.mxu0 0.0
    %765 = vmatprep.subr.mxu0 0.0
    %766 = vmatpush1.msra.mxu0 0.0
    %767 = vmatprep.subr.mxu0 0.0
    %768 = vmatpush1.msra.mxu0 0.0
    %769 = vmatprep.subr.mxu0 0.0
    %770 = vmatpush1.msra.mxu0 0.0
    %771 = vmatprep.subr.mxu0 0.0
    %772 = vmatpush1.msra.mxu0 0.0
    %773 = vmatprep.subr.mxu0 0.0
    %774 = vmatpush1.msra.mxu0 0.0
    %775 = vmatprep.subr.mxu0 0.0
    %776 = vmatpush1.msra.mxu0 0.0
    %777 = vmatprep.subr.mxu0 0.0
    %778 = vmatpush1.msra.mxu0 0.0
    %779 = vmatprep.mubr.f32.mxu0 0.0
    %780 = vmatmul.mubr.f32.gmra.mrb[0].mxu0 %v701
    %v781 = vpop.f32.mrb[0].mxu0
    %v782 = vadd.f32 0.0, %v781
    %v783 = vpop.f32.mrb[0].mxu0
    %v784 = vadd.f32 0.0, %v783
    %785 = vdwg.mxu0
    %786 = vmatprep.subr.mxu0 %v24
    %787 = vmatpush1.msra.mxu0 %v23
    %788 = vmatprep.subr.mxu0 %v28
    %789 = vmatpush1.msra.mxu0 %v27
    %790 = vmatprep.subr.mxu0 %v32
    %791 = vmatpush1.msra.mxu0 %v31
    %792 = vmatprep.subr.mxu0 %v36
    %793 = vmatpush1.msra.mxu0 %v35
    %794 = vmatprep.subr.mxu0 %v40
    %795 = vmatpush1.msra.mxu0 %v39
    %796 = vmatprep.subr.mxu0 %v44
    %797 = vmatpush1.msra.mxu0 %v43
    %798 = vmatprep.subr.mxu0 %v48
    %799 = vmatpush1.msra.mxu0 %v47
    %800 = vmatprep.subr.mxu0 %v52
    %801 = vmatpush1.msra.mxu0 %v51
    %802 = vmatprep.subr.mxu0 %v56
    %803 = vmatpush1.msra.mxu0 %v55
    %804 = vmatprep.subr.mxu0 %v60
    %805 = vmatpush1.msra.mxu0 %v59
    %806 = vmatprep.subr.mxu0 %v64
    %807 = vmatpush1.msra.mxu0 %v63
    %808 = vmatprep.subr.mxu0 %v68
    %809 = vmatpush1.msra.mxu0 %v67
    %810 = vmatprep.subr.mxu0 %v72
    %811 = vmatpush1.msra.mxu0 %v71
    %812 = vmatprep.subr.mxu0 %v76
    %813 = vmatpush1.msra.mxu0 %v75
    %814 = vmatprep.subr.mxu0 %v80
    %815 = vmatpush1.msra.mxu0 %v79
    %816 = vmatprep.subr.mxu0 %v84
    %817 = vmatpush1.msra.mxu0 %v83
    %818 = vmatprep.subr.mxu0 0.0
    %819 = vmatpush1.msra.mxu0 0.0
    %820 = vmatprep.subr.mxu0 0.0
    %821 = vmatpush1.msra.mxu0 0.0
    %822 = vmatprep.subr.mxu0 0.0
    %823 = vmatpush1.msra.mxu0 0.0
    %824 = vmatprep.subr.mxu0 0.0
    %825 = vmatpush1.msra.mxu0 0.0
    %826 = vmatprep.subr.mxu0 0.0
    %827 = vmatpush1.msra.mxu0 0.0
    %828 = vmatprep.subr.mxu0 0.0
    %829 = vmatpush1.msra.mxu0 0.0
    %830 = vmatprep.subr.mxu0 0.0
    %831 = vmatpush1.msra.mxu0 0.0
    %832 = vmatprep.subr.mxu0 0.0
    %833 = vmatpush1.msra.mxu0 0.0
    %834 = vmatprep.subr.mxu0 0.0
    %835 = vmatpush1.msra.mxu0 0.0
    %836 = vmatprep.subr.mxu0 0.0
    %837 = vmatpush1.msra.mxu0 0.0
    %838 = vmatprep.subr.mxu0 0.0
    %839 = vmatpush1.msra.mxu0 0.0
    %840 = vmatprep.subr.mxu0 0.0
    %841 = vmatpush1.msra.mxu0 0.0
    %842 = vmatprep.subr.mxu0 0.0
    %843 = vmatpush1.msra.mxu0 0.0
    %844 = vmatprep.subr.mxu0 0.0
    %845 = vmatpush1.msra.mxu0 0.0
    %846 = vmatprep.subr.mxu0 0.0
    %847 = vmatpush1.msra.mxu0 0.0
    %848 = vmatprep.subr.mxu0 0.0
    %849 = vmatpush1.msra.mxu0 0.0
    %850 = vmatprep.mubr.f32.mxu0 0.0
    %851 = vmatmul.mubr.f32.gmra.mrb[0].mxu0 %v701
    %v852 = vpop.f32.mrb[0].mxu0
    %v853 = vadd.f32 0.0, %v852
    %v854 = vpop.f32.mrb[0].mxu0
    %v855 = vadd.f32 0.0, %v854
    %856 = vdwg.mxu0
    %v861 = vcombine.low %v782, %v784
    %v862 = vcombine.low %v853, %v855
    %v864 = vunpack.c.l.s4 1983009808
    %v865 = vunpack.c.0.s8 %v864
    %v866 = vlaneseq
    %v867 = vshrl.u32 %v866, 7
    %v868 = vsub.s32 %v865, %v867
    %v869 = vrot.slane %v861, %v868
    %v871 = vunpack.c.l.s4 1983009808
    %v872 = vunpack.c.0.s8 %v871
    %v873 = vlaneseq
    %v874 = vshrl.u32 %v873, 7
    %v875 = vsub.s32 %v872, %v874
    %v876 = vrot.slane %v862, %v875
    %v877 = vcombine.low %v869, %v876
    %v879 = vadd.f32 %v714, %v877
    %v880 = vxor.u32 %v879, 2147483648
    %v881 = vmul.f32 %v880, 1.442695
    %v882 = vpow.pop %v881
    %v883 = vadd.f32 %v882, 1.0
    %v884 = vrcp.pop %v883
    %v885 = vmul.f32 1.0, %v884
    %v887 = vrot.slane %v879, 2
    %v889 = vxor.u32 %v887, 2147483648
    %v890 = vmul.f32 %v889, 1.442695
    %v891 = vpow.pop %v890
    %v892 = vadd.f32 %v891, 1.0
    %v893 = vrcp.pop %v892
    %v894 = vmul.f32 1.0, %v893
    %v895 = vrot.slane %v879, 4
    %v897 = vtanh.pop %v895
    %v898 = vrot.slane %v879, 6
    %v900 = vxor.u32 %v898, 2147483648
    %v901 = vmul.f32 %v900, 1.442695
    %v902 = vpow.pop %v901
    %v903 = vadd.f32 %v902, 1.0
    %v904 = vrcp.pop %v903
    %v905 = vmul.f32 1.0, %v904
    %v906 = vmul.f32 %v894, %v699
    %v907 = vmul.f32 %v885, %v897
    %v908 = vadd.f32 %v906, %v907
    %v909 = vtanh.pop %v908
    %v910 = vmul.f32 %v905, %v909
    %s911 = sadd.s32 %s86, 3
    %v912 = vstv %s911
    %vm913 = vcmp.lt.s32.totalorder %v912, %v85
    %v914 = vsel %vm913, 1, 0
    %915 = vset.pattern.permute.xlu0 0
    %916 = vperm.xlu0 %915, %v914
    %v917 = vpop.permute.xlu0 %916
    %vm918 = vcmp.eq.s32.totalorder %v917, 1
    %v919 = vsel %vm918, %v910, 0.0
    %s920 = scalar_lea.vmem [#allocation4], 6
    %921 = vst [vmem:[%s920] sm:$0x3] %v919
    %s922 = scalar_lea.vmem %s0, 32
    %v923 = vld [vmem:[%s922] sm:$0xff]
    %924 = vmatprep.subr.mxu0 %v22
    %925 = vmatpush1.msra.mxu0 %v21
    %926 = vmatprep.subr.mxu0 %v26
    %927 = vmatpush1.msra.mxu0 %v25
    %928 = vmatprep.subr.mxu0 %v30
    %929 = vmatpush1.msra.mxu0 %v29
    %930 = vmatprep.subr.mxu0 %v34
    %931 = vmatpush1.msra.mxu0 %v33
    %932 = vmatprep.subr.mxu0 %v38
    %933 = vmatpush1.msra.mxu0 %v37
    %934 = vmatprep.subr.mxu0 %v42
    %935 = vmatpush1.msra.mxu0 %v41
    %936 = vmatprep.subr.mxu0 %v46
    %937 = vmatpush1.msra.mxu0 %v45
    %938 = vmatprep.subr.mxu0 %v50
    %939 = vmatpush1.msra.mxu0 %v49
    %940 = vmatprep.subr.mxu0 %v54
    %941 = vmatpush1.msra.mxu0 %v53
    %942 = vmatprep.subr.mxu0 %v58
    %943 = vmatpush1.msra.mxu0 %v57
    %944 = vmatprep.subr.mxu0 %v62
    %945 = vmatpush1.msra.mxu0 %v61
    %946 = vmatprep.subr.mxu0 %v66
    %947 = vmatpush1.msra.mxu0 %v65
    %948 = vmatprep.subr.mxu0 %v70
    %949 = vmatpush1.msra.mxu0 %v69
    %950 = vmatprep.subr.mxu0 %v74
    %951 = vmatpush1.msra.mxu0 %v73
    %952 = vmatprep.subr.mxu0 %v78
    %953 = vmatpush1.msra.mxu0 %v77
    %954 = vmatprep.subr.mxu0 %v82
    %955 = vmatpush1.msra.mxu0 %v81
    %956 = vmatprep.subr.mxu0 0.0
    %957 = vmatpush1.msra.mxu0 0.0
    %958 = vmatprep.subr.mxu0 0.0
    %959 = vmatpush1.msra.mxu0 0.0
    %960 = vmatprep.subr.mxu0 0.0
    %961 = vmatpush1.msra.mxu0 0.0
    %962 = vmatprep.subr.mxu0 0.0
    %963 = vmatpush1.msra.mxu0 0.0
    %964 = vmatprep.subr.mxu0 0.0
    %965 = vmatpush1.msra.mxu0 0.0
    %966 = vmatprep.subr.mxu0 0.0
    %967 = vmatpush1.msra.mxu0 0.0
    %968 = vmatprep.subr.mxu0 0.0
    %969 = vmatpush1.msra.mxu0 0.0
    %970 = vmatprep.subr.mxu0 0.0
    %971 = vmatpush1.msra.mxu0 0.0
    %972 = vmatprep.subr.mxu0 0.0
    %973 = vmatpush1.msra.mxu0 0.0
    %974 = vmatprep.subr.mxu0 0.0
    %975 = vmatpush1.msra.mxu0 0.0
    %976 = vmatprep.subr.mxu0 0.0
    %977 = vmatpush1.msra.mxu0 0.0
    %978 = vmatprep.subr.mxu0 0.0
    %979 = vmatpush1.msra.mxu0 0.0
    %980 = vmatprep.subr.mxu0 0.0
    %981 = vmatpush1.msra.mxu0 0.0
    %982 = vmatprep.subr.mxu0 0.0
    %983 = vmatpush1.msra.mxu0 0.0
    %984 = vmatprep.subr.mxu0 0.0
    %985 = vmatpush1.msra.mxu0 0.0
    %986 = vmatprep.subr.mxu0 0.0
    %987 = vmatpush1.msra.mxu0 0.0
    %988 = vmatprep.mubr.f32.mxu0 0.0
    %989 = vmatmul.mubr.f32.gmra.mrb[0].mxu0 %v910
    %v990 = vpop.f32.mrb[0].mxu0
    %v991 = vadd.f32 0.0, %v990
    %v992 = vpop.f32.mrb[0].mxu0
    %v993 = vadd.f32 0.0, %v992
    %994 = vdwg.mxu0
    %995 = vmatprep.subr.mxu0 %v24
    %996 = vmatpush1.msra.mxu0 %v23
    %997 = vmatprep.subr.mxu0 %v28
    %998 = vmatpush1.msra.mxu0 %v27
    %999 = vmatprep.subr.mxu0 %v32
    %1000 = vmatpush1.msra.mxu0 %v31
    %1001 = vmatprep.subr.mxu0 %v36
    %1002 = vmatpush1.msra.mxu0 %v35
    %1003 = vmatprep.subr.mxu0 %v40
    %1004 = vmatpush1.msra.mxu0 %v39
    %1005 = vmatprep.subr.mxu0 %v44
    %1006 = vmatpush1.msra.mxu0 %v43
    %1007 = vmatprep.subr.mxu0 %v48
    %1008 = vmatpush1.msra.mxu0 %v47
    %1009 = vmatprep.subr.mxu0 %v52
    %1010 = vmatpush1.msra.mxu0 %v51
    %1011 = vmatprep.subr.mxu0 %v56
    %1012 = vmatpush1.msra.mxu0 %v55
    %1013 = vmatprep.subr.mxu0 %v60
    %1014 = vmatpush1.msra.mxu0 %v59
    %1015 = vmatprep.subr.mxu0 %v64
    %1016 = vmatpush1.msra.mxu0 %v63
    %1017 = vmatprep.subr.mxu0 %v68
    %1018 = vmatpush1.msra.mxu0 %v67
    %1019 = vmatprep.subr.mxu0 %v72
    %1020 = vmatpush1.msra.mxu0 %v71
    %1021 = vmatprep.subr.mxu0 %v76
    %1022 = vmatpush1.msra.mxu0 %v75
    %1023 = vmatprep.subr.mxu0 %v80
    %1024 = vmatpush1.msra.mxu0 %v79
    %1025 = vmatprep.subr.mxu0 %v84
    %1026 = vmatpush1.msra.mxu0 %v83
    %1027 = vmatprep.subr.mxu0 0.0
    %1028 = vmatpush1.msra.mxu0 0.0
    %1029 = vmatprep.subr.mxu0 0.0
    %1030 = vmatpush1.msra.mxu0 0.0
    %1031 = vmatprep.subr.mxu0 0.0
    %1032 = vmatpush1.msra.mxu0 0.0
    %1033 = vmatprep.subr.mxu0 0.0
    %1034 = vmatpush1.msra.mxu0 0.0
    %1035 = vmatprep.subr.mxu0 0.0
    %1036 = vmatpush1.msra.mxu0 0.0
    %1037 = vmatprep.subr.mxu0 0.0
    %1038 = vmatpush1.msra.mxu0 0.0
    %1039 = vmatprep.subr.mxu0 0.0
    %1040 = vmatpush1.msra.mxu0 0.0
    %1041 = vmatprep.subr.mxu0 0.0
    %1042 = vmatpush1.msra.mxu0 0.0
    %1043 = vmatprep.subr.mxu0 0.0
    %1044 = vmatpush1.msra.mxu0 0.0
    %1045 = vmatprep.subr.mxu0 0.0
    %1046 = vmatpush1.msra.mxu0 0.0
    %1047 = vmatprep.subr.mxu0 0.0
    %1048 = vmatpush1.msra.mxu0 0.0
    %1049 = vmatprep.subr.mxu0 0.0
    %1050 = vmatpush1.msra.mxu0 0.0
    %1051 = vmatprep.subr.mxu0 0.0
    %1052 = vmatpush1.msra.mxu0 0.0
    %1053 = vmatprep.subr.mxu0 0.0
    %1054 = vmatpush1.msra.mxu0 0.0
    %1055 = vmatprep.subr.mxu0 0.0
    %1056 = vmatpush1.msra.mxu0 0.0
    %1057 = vmatprep.subr.mxu0 0.0
    %1058 = vmatpush1.msra.mxu0 0.0
    %1059 = vmatprep.mubr.f32.mxu0 0.0
    %1060 = vmatmul.mubr.f32.gmra.mrb[0].mxu0 %v910
    %v1061 = vpop.f32.mrb[0].mxu0
    %v1062 = vadd.f32 0.0, %v1061
    %v1063 = vpop.f32.mrb[0].mxu0
    %v1064 = vadd.f32 0.0, %v1063
    %1065 = vdwg.mxu0
    %v1070 = vcombine.low %v991, %v993
    %v1071 = vcombine.low %v1062, %v1064
    %v1073 = vunpack.c.l.s4 1983009808
    %v1074 = vunpack.c.0.s8 %v1073
    %v1075 = vlaneseq
    %v1076 = vshrl.u32 %v1075, 7
    %v1077 = vsub.s32 %v1074, %v1076
    %v1078 = vrot.slane %v1070, %v1077
    %v1080 = vunpack.c.l.s4 1983009808
    %v1081 = vunpack.c.0.s8 %v1080
    %v1082 = vlaneseq
    %v1083 = vshrl.u32 %v1082, 7
    %v1084 = vsub.s32 %v1081, %v1083
    %v1085 = vrot.slane %v1071, %v1084
    %v1086 = vcombine.low %v1078, %v1085
    %v1088 = vadd.f32 %v923, %v1086
    %v1089 = vxor.u32 %v1088, 2147483648
    %v1090 = vmul.f32 %v1089, 1.442695
    %v1091 = vpow.pop %v1090
    %v1092 = vadd.f32 %v1091, 1.0
    %v1093 = vrcp.pop %v1092
    %v1094 = vmul.f32 1.0, %v1093
    %v1096 = vrot.slane %v1088, 2
    %v1098 = vxor.u32 %v1096, 2147483648
    %v1099 = vmul.f32 %v1098, 1.442695
    %v1100 = vpow.pop %v1099
    %v1101 = vadd.f32 %v1100, 1.0
    %v1102 = vrcp.pop %v1101
    %v1103 = vmul.f32 1.0, %v1102
    %v1104 = vrot.slane %v1088, 4
    %v1106 = vtanh.pop %v1104
    %v1107 = vrot.slane %v1088, 6
    %v1109 = vxor.u32 %v1107, 2147483648
    %v1110 = vmul.f32 %v1109, 1.442695
    %v1111 = vpow.pop %v1110
    %v1112 = vadd.f32 %v1111, 1.0
    %v1113 = vrcp.pop %v1112
    %v1114 = vmul.f32 1.0, %v1113
    %v1115 = vmul.f32 %v1103, %v908
    %v1116 = vmul.f32 %v1094, %v1106
    %v1117 = vadd.f32 %v1115, %v1116
    %v1118 = vtanh.pop %v1117
    %v1119 = vmul.f32 %v1114, %v1118
    %s1120 = sadd.s32 %s86, 4
    %v1121 = vstv %s1120
    %vm1122 = vcmp.lt.s32.totalorder %v1121, %v85
    %v1123 = vsel %vm1122, 1, 0
    %1124 = vset.pattern.permute.xlu0 0
    %1125 = vperm.xlu0 %1124, %v1123
    %v1126 = vpop.permute.xlu0 %1125
    %vm1127 = vcmp.eq.s32.totalorder %v1126, 1
    %v1128 = vsel %vm1127, %v1119, 0.0
    %s1129 = scalar_lea.vmem [#allocation4], 8
    %1130 = vst [vmem:[%s1129] sm:$0x3] %v1128
    %s1131 = scalar_lea.vmem %s0, 40
    %v1132 = vld [vmem:[%s1131] sm:$0xff]
    %1133 = vmatprep.subr.mxu0 %v22
    %1134 = vmatpush1.msra.mxu0 %v21
    %1135 = vmatprep.subr.mxu0 %v26
    %1136 = vmatpush1.msra.mxu0 %v25
    %1137 = vmatprep.subr.mxu0 %v30
    %1138 = vmatpush1.msra.mxu0 %v29
    %1139 = vmatprep.subr.mxu0 %v34
    %1140 = vmatpush1.msra.mxu0 %v33
    %1141 = vmatprep.subr.mxu0 %v38
    %1142 = vmatpush1.msra.mxu0 %v37
    %1143 = vmatprep.subr.mxu0 %v42
    %1144 = vmatpush1.msra.mxu0 %v41
    %1145 = vmatprep.subr.mxu0 %v46
    %1146 = vmatpush1.msra.mxu0 %v45
    %1147 = vmatprep.subr.mxu0 %v50
    %1148 = vmatpush1.msra.mxu0 %v49
    %1149 = vmatprep.subr.mxu0 %v54
    %1150 = vmatpush1.msra.mxu0 %v53
    %1151 = vmatprep.subr.mxu0 %v58
    %1152 = vmatpush1.msra.mxu0 %v57
    %1153 = vmatprep.subr.mxu0 %v62
    %1154 = vmatpush1.msra.mxu0 %v61
    %1155 = vmatprep.subr.mxu0 %v66
    %1156 = vmatpush1.msra.mxu0 %v65
    %1157 = vmatprep.subr.mxu0 %v70
    %1158 = vmatpush1.msra.mxu0 %v69
    %1159 = vmatprep.subr.mxu0 %v74
    %1160 = vmatpush1.msra.mxu0 %v73
    %1161 = vmatprep.subr.mxu0 %v78
    %1162 = vmatpush1.msra.mxu0 %v77
    %1163 = vmatprep.subr.mxu0 %v82
    %1164 = vmatpush1.msra.mxu0 %v81
    %1165 = vmatprep.subr.mxu0 0.0
    %1166 = vmatpush1.msra.mxu0 0.0
    %1167 = vmatprep.subr.mxu0 0.0
    %1168 = vmatpush1.msra.mxu0 0.0
    %1169 = vmatprep.subr.mxu0 0.0
    %1170 = vmatpush1.msra.mxu0 0.0
    %1171 = vmatprep.subr.mxu0 0.0
    %1172 = vmatpush1.msra.mxu0 0.0
    %1173 = vmatprep.subr.mxu0 0.0
    %1174 = vmatpush1.msra.mxu0 0.0
    %1175 = vmatprep.subr.mxu0 0.0
    %1176 = vmatpush1.msra.mxu0 0.0
    %1177 = vmatprep.subr.mxu0 0.0
    %1178 = vmatpush1.msra.mxu0 0.0
    %1179 = vmatprep.subr.mxu0 0.0
    %1180 = vmatpush1.msra.mxu0 0.0
    %1181 = vmatprep.subr.mxu0 0.0
    %1182 = vmatpush1.msra.mxu0 0.0
    %1183 = vmatprep.subr.mxu0 0.0
    %1184 = vmatpush1.msra.mxu0 0.0
    %1185 = vmatprep.subr.mxu0 0.0
    %1186 = vmatpush1.msra.mxu0 0.0
    %1187 = vmatprep.subr.mxu0 0.0
    %1188 = vmatpush1.msra.mxu0 0.0
    %1189 = vmatprep.subr.mxu0 0.0
    %1190 = vmatpush1.msra.mxu0 0.0
    %1191 = vmatprep.subr.mxu0 0.0
    %1192 = vmatpush1.msra.mxu0 0.0
    %1193 = vmatprep.subr.mxu0 0.0
    %1194 = vmatpush1.msra.mxu0 0.0
    %1195 = vmatprep.subr.mxu0 0.0
    %1196 = vmatpush1.msra.mxu0 0.0
    %1197 = vmatprep.mubr.f32.mxu0 0.0
    %1198 = vmatmul.mubr.f32.gmra.mrb[0].mxu0 %v1119
    %v1199 = vpop.f32.mrb[0].mxu0
    %v1200 = vadd.f32 0.0, %v1199
    %v1201 = vpop.f32.mrb[0].mxu0
    %v1202 = vadd.f32 0.0, %v1201
    %1203 = vdwg.mxu0
    %1204 = vmatprep.subr.mxu0 %v24
    %1205 = vmatpush1.msra.mxu0 %v23
    %1206 = vmatprep.subr.mxu0 %v28
    %1207 = vmatpush1.msra.mxu0 %v27
    %1208 = vmatprep.subr.mxu0 %v32
    %1209 = vmatpush1.msra.mxu0 %v31
    %1210 = vmatprep.subr.mxu0 %v36
    %1211 = vmatpush1.msra.mxu0 %v35
    %1212 = vmatprep.subr.mxu0 %v40
    %1213 = vmatpush1.msra.mxu0 %v39
    %1214 = vmatprep.subr.mxu0 %v44
    %1215 = vmatpush1.msra.mxu0 %v43
    %1216 = vmatprep.subr.mxu0 %v48
    %1217 = vmatpush1.msra.mxu0 %v47
    %1218 = vmatprep.subr.mxu0 %v52
    %1219 = vmatpush1.msra.mxu0 %v51
    %1220 = vmatprep.subr.mxu0 %v56
    %1221 = vmatpush1.msra.mxu0 %v55
    %1222 = vmatprep.subr.mxu0 %v60
    %1223 = vmatpush1.msra.mxu0 %v59
    %1224 = vmatprep.subr.mxu0 %v64
    %1225 = vmatpush1.msra.mxu0 %v63
    %1226 = vmatprep.subr.mxu0 %v68
    %1227 = vmatpush1.msra.mxu0 %v67
    %1228 = vmatprep.subr.mxu0 %v72
    %1229 = vmatpush1.msra.mxu0 %v71
    %1230 = vmatprep.subr.mxu0 %v76
    %1231 = vmatpush1.msra.mxu0 %v75
    %1232 = vmatprep.subr.mxu0 %v80
    %1233 = vmatpush1.msra.mxu0 %v79
    %1234 = vmatprep.subr.mxu0 %v84
    %1235 = vmatpush1.msra.mxu0 %v83
    %1236 = vmatprep.subr.mxu0 0.0
    %1237 = vmatpush1.msra.mxu0 0.0
    %1238 = vmatprep.subr.mxu0 0.0
    %1239 = vmatpush1.msra.mxu0 0.0
    %1240 = vmatprep.subr.mxu0 0.0
    %1241 = vmatpush1.msra.mxu0 0.0
    %1242 = vmatprep.subr.mxu0 0.0
    %1243 = vmatpush1.msra.mxu0 0.0
    %1244 = vmatprep.subr.mxu0 0.0
    %1245 = vmatpush1.msra.mxu0 0.0
    %1246 = vmatprep.subr.mxu0 0.0
    %1247 = vmatpush1.msra.mxu0 0.0
    %1248 = vmatprep.subr.mxu0 0.0
    %1249 = vmatpush1.msra.mxu0 0.0
    %1250 = vmatprep.subr.mxu0 0.0
    %1251 = vmatpush1.msra.mxu0 0.0
    %1252 = vmatprep.subr.mxu0 0.0
    %1253 = vmatpush1.msra.mxu0 0.0
    %1254 = vmatprep.subr.mxu0 0.0
    %1255 = vmatpush1.msra.mxu0 0.0
    %1256 = vmatprep.subr.mxu0 0.0
    %1257 = vmatpush1.msra.mxu0 0.0
    %1258 = vmatprep.subr.mxu0 0.0
    %1259 = vmatpush1.msra.mxu0 0.0
    %1260 = vmatprep.subr.mxu0 0.0
    %1261 = vmatpush1.msra.mxu0 0.0
    %1262 = vmatprep.subr.mxu0 0.0
    %1263 = vmatpush1.msra.mxu0 0.0
    %1264 = vmatprep.subr.mxu0 0.0
    %1265 = vmatpush1.msra.mxu0 0.0
    %1266 = vmatprep.subr.mxu0 0.0
    %1267 = vmatpush1.msra.mxu0 0.0
    %1268 = vmatprep.mubr.f32.mxu0 0.0
    %1269 = vmatmul.mubr.f32.gmra.mrb[0].mxu0 %v1119
    %v1270 = vpop.f32.mrb[0].mxu0
    %v1271 = vadd.f32 0.0, %v1270
    %v1272 = vpop.f32.mrb[0].mxu0
    %v1273 = vadd.f32 0.0, %v1272
    %1274 = vdwg.mxu0
    %v1279 = vcombine.low %v1200, %v1202
    %v1280 = vcombine.low %v1271, %v1273
    %v1282 = vunpack.c.l.s4 1983009808
    %v1283 = vunpack.c.0.s8 %v1282
    %v1284 = vlaneseq
    %v1285 = vshrl.u32 %v1284, 7
    %v1286 = vsub.s32 %v1283, %v1285
    %v1287 = vrot.slane %v1279, %v1286
    %v1289 = vunpack.c.l.s4 1983009808
    %v1290 = vunpack.c.0.s8 %v1289
    %v1291 = vlaneseq
    %v1292 = vshrl.u32 %v1291, 7
    %v1293 = vsub.s32 %v1290, %v1292
    %v1294 = vrot.slane %v1280, %v1293
    %v1295 = vcombine.low %v1287, %v1294
    %v1297 = vadd.f32 %v1132, %v1295
    %v1298 = vxor.u32 %v1297, 2147483648
    %v1299 = vmul.f32 %v1298, 1.442695
    %v1300 = vpow.pop %v1299
    %v1301 = vadd.f32 %v1300, 1.0
    %v1302 = vrcp.pop %v1301
    %v1303 = vmul.f32 1.0, %v1302
    %v1305 = vrot.slane %v1297, 2
    %v1307 = vxor.u32 %v1305, 2147483648
    %v1308 = vmul.f32 %v1307, 1.442695
    %v1309 = vpow.pop %v1308
    %v1310 = vadd.f32 %v1309, 1.0
    %v1311 = vrcp.pop %v1310
    %v1312 = vmul.f32 1.0, %v1311
    %v1313 = vrot.slane %v1297, 4
    %v1315 = vtanh.pop %v1313
    %v1316 = vrot.slane %v1297, 6
    %v1318 = vxor.u32 %v1316, 2147483648
    %v1319 = vmul.f32 %v1318, 1.442695
    %v1320 = vpow.pop %v1319
    %v1321 = vadd.f32 %v1320, 1.0
    %v1322 = vrcp.pop %v1321
    %v1323 = vmul.f32 1.0, %v1322
    %v1324 = vmul.f32 %v1312, %v1117
    %v1325 = vmul.f32 %v1303, %v1315
    %v1326 = vadd.f32 %v1324, %v1325
    %v1327 = vtanh.pop %v1326
    %v1328 = vmul.f32 %v1323, %v1327
    %s1329 = sadd.s32 %s86, 5
    %v1330 = vstv %s1329
    %vm1331 = vcmp.lt.s32.totalorder %v1330, %v85
    %v1332 = vsel %vm1331, 1, 0
    %1333 = vset.pattern.permute.xlu0 0
    %1334 = vperm.xlu0 %1333, %v1332
    %v1335 = vpop.permute.xlu0 %1334
    %vm1336 = vcmp.eq.s32.totalorder %v1335, 1
    %v1337 = vsel %vm1336, %v1328, 0.0
    %s1338 = scalar_lea.vmem [#allocation4], 10
    %1339 = vst [vmem:[%s1338] sm:$0x3] %v1337
    %s1340 = scalar_lea.vmem %s0, 48
    %v1341 = vld [vmem:[%s1340] sm:$0xff]
    %1342 = vmatprep.subr.mxu0 %v22
    %1343 = vmatpush1.msra.mxu0 %v21
    %1344 = vmatprep.subr.mxu0 %v26
    %1345 = vmatpush1.msra.mxu0 %v25
    %1346 = vmatprep.subr.mxu0 %v30
    %1347 = vmatpush1.msra.mxu0 %v29
    %1348 = vmatprep.subr.mxu0 %v34
    %1349 = vmatpush1.msra.mxu0 %v33
    %1350 = vmatprep.subr.mxu0 %v38
    %1351 = vmatpush1.msra.mxu0 %v37
    %1352 = vmatprep.subr.mxu0 %v42
    %1353 = vmatpush1.msra.mxu0 %v41
    %1354 = vmatprep.subr.mxu0 %v46
    %1355 = vmatpush1.msra.mxu0 %v45
    %1356 = vmatprep.subr.mxu0 %v50
    %1357 = vmatpush1.msra.mxu0 %v49
    %1358 = vmatprep.subr.mxu0 %v54
    %1359 = vmatpush1.msra.mxu0 %v53
    %1360 = vmatprep.subr.mxu0 %v58
    %1361 = vmatpush1.msra.mxu0 %v57
    %1362 = vmatprep.subr.mxu0 %v62
    %1363 = vmatpush1.msra.mxu0 %v61
    %1364 = vmatprep.subr.mxu0 %v66
    %1365 = vmatpush1.msra.mxu0 %v65
    %1366 = vmatprep.subr.mxu0 %v70
    %1367 = vmatpush1.msra.mxu0 %v69
    %1368 = vmatprep.subr.mxu0 %v74
    %1369 = vmatpush1.msra.mxu0 %v73
    %1370 = vmatprep.subr.mxu0 %v78
    %1371 = vmatpush1.msra.mxu0 %v77
    %1372 = vmatprep.subr.mxu0 %v82
    %1373 = vmatpush1.msra.mxu0 %v81
    %1374 = vmatprep.subr.mxu0 0.0
    %1375 = vmatpush1.msra.mxu0 0.0
    %1376 = vmatprep.subr.mxu0 0.0
    %1377 = vmatpush1.msra.mxu0 0.0
    %1378 = vmatprep.subr.mxu0 0.0
    %1379 = vmatpush1.msra.mxu0 0.0
    %1380 = vmatprep.subr.mxu0 0.0
    %1381 = vmatpush1.msra.mxu0 0.0
    %1382 = vmatprep.subr.mxu0 0.0
    %1383 = vmatpush1.msra.mxu0 0.0
    %1384 = vmatprep.subr.mxu0 0.0
    %1385 = vmatpush1.msra.mxu0 0.0
    %1386 = vmatprep.subr.mxu0 0.0
    %1387 = vmatpush1.msra.mxu0 0.0
    %1388 = vmatprep.subr.mxu0 0.0
    %1389 = vmatpush1.msra.mxu0 0.0
    %1390 = vmatprep.subr.mxu0 0.0
    %1391 = vmatpush1.msra.mxu0 0.0
    %1392 = vmatprep.subr.mxu0 0.0
    %1393 = vmatpush1.msra.mxu0 0.0
    %1394 = vmatprep.subr.mxu0 0.0
    %1395 = vmatpush1.msra.mxu0 0.0
    %1396 = vmatprep.subr.mxu0 0.0
    %1397 = vmatpush1.msra.mxu0 0.0
    %1398 = vmatprep.subr.mxu0 0.0
    %1399 = vmatpush1.msra.mxu0 0.0
    %1400 = vmatprep.subr.mxu0 0.0
    %1401 = vmatpush1.msra.mxu0 0.0
    %1402 = vmatprep.subr.mxu0 0.0
    %1403 = vmatpush1.msra.mxu0 0.0
    %1404 = vmatprep.subr.mxu0 0.0
    %1405 = vmatpush1.msra.mxu0 0.0
    %1406 = vmatprep.mubr.f32.mxu0 0.0
    %1407 = vmatmul.mubr.f32.gmra.mrb[0].mxu0 %v1328
    %v1408 = vpop.f32.mrb[0].mxu0
    %v1409 = vadd.f32 0.0, %v1408
    %v1410 = vpop.f32.mrb[0].mxu0
    %v1411 = vadd.f32 0.0, %v1410
    %1412 = vdwg.mxu0
    %1413 = vmatprep.subr.mxu0 %v24
    %1414 = vmatpush1.msra.mxu0 %v23
    %1415 = vmatprep.subr.mxu0 %v28
    %1416 = vmatpush1.msra.mxu0 %v27
    %1417 = vmatprep.subr.mxu0 %v32
    %1418 = vmatpush1.msra.mxu0 %v31
    %1419 = vmatprep.subr.mxu0 %v36
    %1420 = vmatpush1.msra.mxu0 %v35
    %1421 = vmatprep.subr.mxu0 %v40
    %1422 = vmatpush1.msra.mxu0 %v39
    %1423 = vmatprep.subr.mxu0 %v44
    %1424 = vmatpush1.msra.mxu0 %v43
    %1425 = vmatprep.subr.mxu0 %v48
    %1426 = vmatpush1.msra.mxu0 %v47
    %1427 = vmatprep.subr.mxu0 %v52
    %1428 = vmatpush1.msra.mxu0 %v51
    %1429 = vmatprep.subr.mxu0 %v56
    %1430 = vmatpush1.msra.mxu0 %v55
    %1431 = vmatprep.subr.mxu0 %v60
    %1432 = vmatpush1.msra.mxu0 %v59
    %1433 = vmatprep.subr.mxu0 %v64
    %1434 = vmatpush1.msra.mxu0 %v63
    %1435 = vmatprep.subr.mxu0 %v68
    %1436 = vmatpush1.msra.mxu0 %v67
    %1437 = vmatprep.subr.mxu0 %v72
    %1438 = vmatpush1.msra.mxu0 %v71
    %1439 = vmatprep.subr.mxu0 %v76
    %1440 = vmatpush1.msra.mxu0 %v75
    %1441 = vmatprep.subr.mxu0 %v80
    %1442 = vmatpush1.msra.mxu0 %v79
    %1443 = vmatprep.subr.mxu0 %v84
    %1444 = vmatpush1.msra.mxu0 %v83
    %1445 = vmatprep.subr.mxu0 0.0
    %1446 = vmatpush1.msra.mxu0 0.0
    %1447 = vmatprep.subr.mxu0 0.0
    %1448 = vmatpush1.msra.mxu0 0.0
    %1449 = vmatprep.subr.mxu0 0.0
    %1450 = vmatpush1.msra.mxu0 0.0
    %1451 = vmatprep.subr.mxu0 0.0
    %1452 = vmatpush1.msra.mxu0 0.0
    %1453 = vmatprep.subr.mxu0 0.0
    %1454 = vmatpush1.msra.mxu0 0.0
    %1455 = vmatprep.subr.mxu0 0.0
    %1456 = vmatpush1.msra.mxu0 0.0
    %1457 = vmatprep.subr.mxu0 0.0
    %1458 = vmatpush1.msra.mxu0 0.0
    %1459 = vmatprep.subr.mxu0 0.0
    %1460 = vmatpush1.msra.mxu0 0.0
    %1461 = vmatprep.subr.mxu0 0.0
    %1462 = vmatpush1.msra.mxu0 0.0
    %1463 = vmatprep.subr.mxu0 0.0
    %1464 = vmatpush1.msra.mxu0 0.0
    %1465 = vmatprep.subr.mxu0 0.0
    %1466 = vmatpush1.msra.mxu0 0.0
    %1467 = vmatprep.subr.mxu0 0.0
    %1468 = vmatpush1.msra.mxu0 0.0
    %1469 = vmatprep.subr.mxu0 0.0
    %1470 = vmatpush1.msra.mxu0 0.0
    %1471 = vmatprep.subr.mxu0 0.0
    %1472 = vmatpush1.msra.mxu0 0.0
    %1473 = vmatprep.subr.mxu0 0.0
    %1474 = vmatpush1.msra.mxu0 0.0
    %1475 = vmatprep.subr.mxu0 0.0
    %1476 = vmatpush1.msra.mxu0 0.0
    %1477 = vmatprep.mubr.f32.mxu0 0.0
    %1478 = vmatmul.mubr.f32.gmra.mrb[0].mxu0 %v1328
    %v1479 = vpop.f32.mrb[0].mxu0
    %v1480 = vadd.f32 0.0, %v1479
    %v1481 = vpop.f32.mrb[0].mxu0
    %v1482 = vadd.f32 0.0, %v1481
    %1483 = vdwg.mxu0
    %v1488 = vcombine.low %v1409, %v1411
    %v1489 = vcombine.low %v1480, %v1482
    %v1491 = vunpack.c.l.s4 1983009808
    %v1492 = vunpack.c.0.s8 %v1491
    %v1493 = vlaneseq
    %v1494 = vshrl.u32 %v1493, 7
    %v1495 = vsub.s32 %v1492, %v1494
    %v1496 = vrot.slane %v1488, %v1495
    %v1498 = vunpack.c.l.s4 1983009808
    %v1499 = vunpack.c.0.s8 %v1498
    %v1500 = vlaneseq
    %v1501 = vshrl.u32 %v1500, 7
    %v1502 = vsub.s32 %v1499, %v1501
    %v1503 = vrot.slane %v1489, %v1502
    %v1504 = vcombine.low %v1496, %v1503
    %v1506 = vadd.f32 %v1341, %v1504
    %v1507 = vxor.u32 %v1506, 2147483648
    %v1508 = vmul.f32 %v1507, 1.442695
    %v1509 = vpow.pop %v1508
    %v1510 = vadd.f32 %v1509, 1.0
    %v1511 = vrcp.pop %v1510
    %v1512 = vmul.f32 1.0, %v1511
    %v1514 = vrot.slane %v1506, 2
    %v1516 = vxor.u32 %v1514, 2147483648
    %v1517 = vmul.f32 %v1516, 1.442695
    %v1518 = vpow.pop %v1517
    %v1519 = vadd.f32 %v1518, 1.0
    %v1520 = vrcp.pop %v1519
    %v1521 = vmul.f32 1.0, %v1520
    %v1522 = vrot.slane %v1506, 4
    %v1524 = vtanh.pop %v1522
    %v1525 = vrot.slane %v1506, 6
    %v1527 = vxor.u32 %v1525, 2147483648
    %v1528 = vmul.f32 %v1527, 1.442695
    %v1529 = vpow.pop %v1528
    %v1530 = vadd.f32 %v1529, 1.0
    %v1531 = vrcp.pop %v1530
    %v1532 = vmul.f32 1.0, %v1531
    %v1533 = vmul.f32 %v1521, %v1326
    %v1534 = vmul.f32 %v1512, %v1524
    %v1535 = vadd.f32 %v1533, %v1534
    %v1536 = vtanh.pop %v1535
    %v1537 = vmul.f32 %v1532, %v1536
    %s1538 = sadd.s32 %s86, 6
    %v1539 = vstv %s1538
    %vm1540 = vcmp.lt.s32.totalorder %v1539, %v85
    %v1541 = vsel %vm1540, 1, 0
    %1542 = vset.pattern.permute.xlu0 0
    %1543 = vperm.xlu0 %1542, %v1541
    %v1544 = vpop.permute.xlu0 %1543
    %vm1545 = vcmp.eq.s32.totalorder %v1544, 1
    %v1546 = vsel %vm1545, %v1537, 0.0
    %s1547 = scalar_lea.vmem [#allocation4], 12
    %1548 = vst [vmem:[%s1547] sm:$0x3] %v1546
    %s1549 = scalar_lea.vmem %s0, 56
    %v1550 = vld [vmem:[%s1549] sm:$0xff]
    %1551 = vmatprep.subr.mxu0 %v22
    %1552 = vmatpush1.msra.mxu0 %v21
    %1553 = vmatprep.subr.mxu0 %v26
    %1554 = vmatpush1.msra.mxu0 %v25
    %1555 = vmatprep.subr.mxu0 %v30
    %1556 = vmatpush1.msra.mxu0 %v29
    %1557 = vmatprep.subr.mxu0 %v34
    %1558 = vmatpush1.msra.mxu0 %v33
    %1559 = vmatprep.subr.mxu0 %v38
    %1560 = vmatpush1.msra.mxu0 %v37
    %1561 = vmatprep.subr.mxu0 %v42
    %1562 = vmatpush1.msra.mxu0 %v41
    %1563 = vmatprep.subr.mxu0 %v46
    %1564 = vmatpush1.msra.mxu0 %v45
    %1565 = vmatprep.subr.mxu0 %v50
    %1566 = vmatpush1.msra.mxu0 %v49
    %1567 = vmatprep.subr.mxu0 %v54
    %1568 = vmatpush1.msra.mxu0 %v53
    %1569 = vmatprep.subr.mxu0 %v58
    %1570 = vmatpush1.msra.mxu0 %v57
    %1571 = vmatprep.subr.mxu0 %v62
    %1572 = vmatpush1.msra.mxu0 %v61
    %1573 = vmatprep.subr.mxu0 %v66
    %1574 = vmatpush1.msra.mxu0 %v65
    %1575 = vmatprep.subr.mxu0 %v70
    %1576 = vmatpush1.msra.mxu0 %v69
    %1577 = vmatprep.subr.mxu0 %v74
    %1578 = vmatpush1.msra.mxu0 %v73
    %1579 = vmatprep.subr.mxu0 %v78
    %1580 = vmatpush1.msra.mxu0 %v77
    %1581 = vmatprep.subr.mxu0 %v82
    %1582 = vmatpush1.msra.mxu0 %v81
    %1583 = vmatprep.subr.mxu0 0.0
    %1584 = vmatpush1.msra.mxu0 0.0
    %1585 = vmatprep.subr.mxu0 0.0
    %1586 = vmatpush1.msra.mxu0 0.0
    %1587 = vmatprep.subr.mxu0 0.0
    %1588 = vmatpush1.msra.mxu0 0.0
    %1589 = vmatprep.subr.mxu0 0.0
    %1590 = vmatpush1.msra.mxu0 0.0
    %1591 = vmatprep.subr.mxu0 0.0
    %1592 = vmatpush1.msra.mxu0 0.0
    %1593 = vmatprep.subr.mxu0 0.0
    %1594 = vmatpush1.msra.mxu0 0.0
    %1595 = vmatprep.subr.mxu0 0.0
    %1596 = vmatpush1.msra.mxu0 0.0
    %1597 = vmatprep.subr.mxu0 0.0
    %1598 = vmatpush1.msra.mxu0 0.0
    %1599 = vmatprep.subr.mxu0 0.0
    %1600 = vmatpush1.msra.mxu0 0.0
    %1601 = vmatprep.subr.mxu0 0.0
    %1602 = vmatpush1.msra.mxu0 0.0
    %1603 = vmatprep.subr.mxu0 0.0
    %1604 = vmatpush1.msra.mxu0 0.0
    %1605 = vmatprep.subr.mxu0 0.0
    %1606 = vmatpush1.msra.mxu0 0.0
    %1607 = vmatprep.subr.mxu0 0.0
    %1608 = vmatpush1.msra.mxu0 0.0
    %1609 = vmatprep.subr.mxu0 0.0
    %1610 = vmatpush1.msra.mxu0 0.0
    %1611 = vmatprep.subr.mxu0 0.0
    %1612 = vmatpush1.msra.mxu0 0.0
    %1613 = vmatprep.subr.mxu0 0.0
    %1614 = vmatpush1.msra.mxu0 0.0
    %1615 = vmatprep.mubr.f32.mxu0 0.0
    %1616 = vmatmul.mubr.f32.gmra.mrb[0].mxu0 %v1537
    %v1617 = vpop.f32.mrb[0].mxu0
    %v1618 = vadd.f32 0.0, %v1617
    %v1619 = vpop.f32.mrb[0].mxu0
    %v1620 = vadd.f32 0.0, %v1619
    %1621 = vdwg.mxu0
    %1622 = vmatprep.subr.mxu0 %v24
    %1623 = vmatpush1.msra.mxu0 %v23
    %1624 = vmatprep.subr.mxu0 %v28
    %1625 = vmatpush1.msra.mxu0 %v27
    %1626 = vmatprep.subr.mxu0 %v32
    %1627 = vmatpush1.msra.mxu0 %v31
    %1628 = vmatprep.subr.mxu0 %v36
    %1629 = vmatpush1.msra.mxu0 %v35
    %1630 = vmatprep.subr.mxu0 %v40
    %1631 = vmatpush1.msra.mxu0 %v39
    %1632 = vmatprep.subr.mxu0 %v44
    %1633 = vmatpush1.msra.mxu0 %v43
    %1634 = vmatprep.subr.mxu0 %v48
    %1635 = vmatpush1.msra.mxu0 %v47
    %1636 = vmatprep.subr.mxu0 %v52
    %1637 = vmatpush1.msra.mxu0 %v51
    %1638 = vmatprep.subr.mxu0 %v56
    %1639 = vmatpush1.msra.mxu0 %v55
    %1640 = vmatprep.subr.mxu0 %v60
    %1641 = vmatpush1.msra.mxu0 %v59
    %1642 = vmatprep.subr.mxu0 %v64
    %1643 = vmatpush1.msra.mxu0 %v63
    %1644 = vmatprep.subr.mxu0 %v68
    %1645 = vmatpush1.msra.mxu0 %v67
    %1646 = vmatprep.subr.mxu0 %v72
    %1647 = vmatpush1.msra.mxu0 %v71
    %1648 = vmatprep.subr.mxu0 %v76
    %1649 = vmatpush1.msra.mxu0 %v75
    %1650 = vmatprep.subr.mxu0 %v80
    %1651 = vmatpush1.msra.mxu0 %v79
    %1652 = vmatprep.subr.mxu0 %v84
    %1653 = vmatpush1.msra.mxu0 %v83
    %1654 = vmatprep.subr.mxu0 0.0
    %1655 = vmatpush1.msra.mxu0 0.0
    %1656 = vmatprep.subr.mxu0 0.0
    %1657 = vmatpush1.msra.mxu0 0.0
    %1658 = vmatprep.subr.mxu0 0.0
    %1659 = vmatpush1.msra.mxu0 0.0
    %1660 = vmatprep.subr.mxu0 0.0
    %1661 = vmatpush1.msra.mxu0 0.0
    %1662 = vmatprep.subr.mxu0 0.0
    %1663 = vmatpush1.msra.mxu0 0.0
    %1664 = vmatprep.subr.mxu0 0.0
    %1665 = vmatpush1.msra.mxu0 0.0
    %1666 = vmatprep.subr.mxu0 0.0
    %1667 = vmatpush1.msra.mxu0 0.0
    %1668 = vmatprep.subr.mxu0 0.0
    %1669 = vmatpush1.msra.mxu0 0.0
    %1670 = vmatprep.subr.mxu0 0.0
    %1671 = vmatpush1.msra.mxu0 0.0
    %1672 = vmatprep.subr.mxu0 0.0
    %1673 = vmatpush1.msra.mxu0 0.0
    %1674 = vmatprep.subr.mxu0 0.0
    %1675 = vmatpush1.msra.mxu0 0.0
    %1676 = vmatprep.subr.mxu0 0.0
    %1677 = vmatpush1.msra.mxu0 0.0
    %1678 = vmatprep.subr.mxu0 0.0
    %1679 = vmatpush1.msra.mxu0 0.0
    %1680 = vmatprep.subr.mxu0 0.0
    %1681 = vmatpush1.msra.mxu0 0.0
    %1682 = vmatprep.subr.mxu0 0.0
    %1683 = vmatpush1.msra.mxu0 0.0
    %1684 = vmatprep.subr.mxu0 0.0
    %1685 = vmatpush1.msra.mxu0 0.0
    %1686 = vmatprep.mubr.f32.mxu0 0.0
    %1687 = vmatmul.mubr.f32.gmra.mrb[0].mxu0 %v1537
    %v1688 = vpop.f32.mrb[0].mxu0
    %v1689 = vadd.f32 0.0, %v1688
    %v1690 = vpop.f32.mrb[0].mxu0
    %v1691 = vadd.f32 0.0, %v1690
    %1692 = vdwg.mxu0
    %v1697 = vcombine.low %v1618, %v1620
    %v1698 = vcombine.low %v1689, %v1691
    %v1700 = vunpack.c.l.s4 1983009808
    %v1701 = vunpack.c.0.s8 %v1700
    %v1702 = vlaneseq
    %v1703 = vshrl.u32 %v1702, 7
    %v1704 = vsub.s32 %v1701, %v1703
    %v1705 = vrot.slane %v1697, %v1704
    %v1707 = vunpack.c.l.s4 1983009808
    %v1708 = vunpack.c.0.s8 %v1707
    %v1709 = vlaneseq
    %v1710 = vshrl.u32 %v1709, 7
    %v1711 = vsub.s32 %v1708, %v1710
    %v1712 = vrot.slane %v1698, %v1711
    %v1713 = vcombine.low %v1705, %v1712
    %v1715 = vadd.f32 %v1550, %v1713
    %v1716 = vxor.u32 %v1715, 2147483648
    %v1717 = vmul.f32 %v1716, 1.442695
    %v1718 = vpow.pop %v1717
    %v1719 = vadd.f32 %v1718, 1.0
    %v1720 = vrcp.pop %v1719
    %v1721 = vmul.f32 1.0, %v1720
    %v1723 = vrot.slane %v1715, 2
    %v1725 = vxor.u32 %v1723, 2147483648
    %v1726 = vmul.f32 %v1725, 1.442695
    %v1727 = vpow.pop %v1726
    %v1728 = vadd.f32 %v1727, 1.0
    %v1729 = vrcp.pop %v1728
    %v1730 = vmul.f32 1.0, %v1729
    %v1731 = vrot.slane %v1715, 4
    %v1733 = vtanh.pop %v1731
    %v1734 = vrot.slane %v1715, 6
    %v1736 = vxor.u32 %v1734, 2147483648
    %v1737 = vmul.f32 %v1736, 1.442695
    %v1738 = vpow.pop %v1737
    %v1739 = vadd.f32 %v1738, 1.0
    %v1740 = vrcp.pop %v1739
    %v1741 = vmul.f32 1.0, %v1740
    %v1742 = vmul.f32 %v1730, %v1535
    %v1743 = vmul.f32 %v1721, %v1733
    %v1744 = vadd.f32 %v1742, %v1743
    %v1745 = vtanh.pop %v1744
    %v1746 = vmul.f32 %v1741, %v1745
    %s1747 = sadd.s32 %s86, 7
    %v1748 = vstv %s1747
    %vm1749 = vcmp.lt.s32.totalorder %v1748, %v85
    %v1750 = vsel %vm1749, 1, 0
    %1751 = vset.pattern.permute.xlu0 0
    %1752 = vperm.xlu0 %1751, %v1750
    %v1753 = vpop.permute.xlu0 %1752
    %vm1754 = vcmp.eq.s32.totalorder %v1753, 1
    %v1755 = vsel %vm1754, %v1746, 0.0
    %s1756 = scalar_lea.vmem [#allocation4], 14
    %1757 = vst [vmem:[%s1756] sm:$0x3] %v1755
    %1758 = vst [vmem:[#allocation2] sm:$0x3] %v1746
    %1759 = vst [vmem:[#allocation3] sm:$0x3] %v1744
    // Predicated region
    $region18: #{rnn_forward.3} parent=1 // pred_check
      _
    $region19: #{rnn_forward.3} parent=1 // pred_check_branch
      %1761 = sbr.rel (0) target = $region21
    $region20: #{rnn_forward.3} parent=1 // pred_region
      %s1763 = ssub.s32 256, 256
      %1764 = vsyncadd [#allocation5], %s1763
      %s1765 = sshll.u32 [#allocation4], 4
      %s1766 = int_to_ptr.vmem [resolvable:$true] %s1765
      %1771 = dma.vmem_to_hbm [thread:$0]  %s1766, 256, %s3, [#allocation5], 32, 32, 2
    $region21: #{rnn_forward.3} parent=1 // pred_fallthru
      _
    // Predicated region
    $region22: #{rnn_forward.3} parent=1 // pred_check
      _
    $region23: #{rnn_forward.3} parent=1 // pred_check_branch
      %1773 = sbr.rel (0) target = $region25
    $region24: #{rnn_forward.3} parent=1 // pred_region
      %1774 = dma.done [#allocation5], 256
    $region25: #{rnn_forward.3} parent=1 // pred_fallthru
      _
    %1775 = vsyncpa [#allocation5], 1

</llo_original>
